<compile_context>
chip_gen: v7x
topology: tpu7x:2x2x1
jax: 0.10.0
libtpu: 0.0.40
codegen_flags: <defaults>
</compile_context>

<pallas_src>
import functools

import jax
import jax.numpy as jnp
from jax.experimental import pallas as pl
from jax.experimental.pallas import tpu as pltpu


def _attention_kernel(x_ref, wqkv_ref, wproj_ref, bproj_ref, o_ref, ctx_ref,
                      *, num_heads, scale):
    _, N, C = x_ref.shape
    D = C // num_heads

    xb = x_ref[0].astype(jnp.bfloat16)                       # (N, C) bf16

    # Fused qkv projection: single MXU pass on lane-dense, pre-transposed weight.
    qkv = jnp.dot(xb, wqkv_ref[...],
                  preferred_element_type=jnp.float32)        # (N, 3C) f32
    qkv = qkv.astype(jnp.bfloat16)

    # Per-head attention with static column slices (no head-major transposes).
    for h in range(num_heads):
        q_h = qkv[:, h * D:(h + 1) * D]                      # (N, D) bf16
        k_h = qkv[:, C + h * D:C + (h + 1) * D]              # (N, D) bf16
        v_h = qkv[:, 2 * C + h * D:2 * C + (h + 1) * D]      # (N, D) bf16

        scores = jnp.einsum("nd,md->nm", q_h, k_h,
                            preferred_element_type=jnp.float32) * scale
        m = jnp.max(scores, axis=-1, keepdims=True)
        e = jnp.exp(scores - m)                              # f32 softmax path
        denom = jnp.sum(e, axis=-1, keepdims=True)
        attn = e * pl.reciprocal(denom, approx=True)
        # attn_drop: p = 0.0 -> identity

        ctx_h = jnp.dot(attn.astype(jnp.bfloat16), v_h,
                        preferred_element_type=jnp.float32)  # (N, D) f32
        ctx_ref[:, h * D:(h + 1) * D] = ctx_h.astype(jnp.bfloat16)

    # Output projection with bias (proj_drop: p = 0.0 -> identity).
    out = jnp.dot(ctx_ref[...], wproj_ref[...],
                  preferred_element_type=jnp.float32) + bproj_ref[...]
    o_ref[0] = out.astype(o_ref.dtype)


def attention_forward(x, w_qkv, w_proj, b_proj, *, num_heads, qk_scale=None):
    """x: (B, N, C); w_qkv: (3C, C); w_proj: (C, C); b_proj: (C,)."""
    B, N, C = x.shape
    D = C // num_heads
    scale = float(qk_scale if qk_scale is not None else D ** -0.5)

    # Host-side (one-time) weight prep: transpose to (in, out) layout and cast
    # MXU operands to bf16.  Column order of Wqkv^T is [q | k | v], each
    # head-major (h*D + d), matching the PyTorch reshape/permute convention.
    w_qkv_t = jnp.asarray(w_qkv.T, dtype=jnp.bfloat16)       # (C, 3C)
    w_proj_t = jnp.asarray(w_proj.T, dtype=jnp.bfloat16)     # (C, C)
    b_proj2 = jnp.asarray(b_proj, dtype=jnp.float32).reshape(1, C)

    kernel = functools.partial(_attention_kernel, num_heads=num_heads, scale=scale)

    itemsize = jnp.dtype(x.dtype).itemsize
    # Working-set estimate: double-buffered x/out tiles + weights, ctx scratch,
    # qkv slab and per-head score temporaries.
    working = (2 * 2 * N * C * itemsize
               + 2 * 2 * (3 * C * C + C * C)
               + 2 * N * C
               + 4 * N * 3 * C
               + 4 * 4 * N * N)
    vmem_limit = int(min(64 * 1024 * 1024, max(16 * 1024 * 1024, 4 * working)))

    flops = int(B * (2 * N * C * (3 * C) + num_heads * 4 * N * N * D + 2 * N * C * C))
    transcendentals = int(B * num_heads * N * N)
    bytes_accessed = int(2 * B * N * C * itemsize + 2 * (3 * C * C + C * C) + 4 * C)

    return pl.pallas_call(
        kernel,
        out_shape=jax.ShapeDtypeStruct((B, N, C), x.dtype),
        grid_spec=pltpu.PrefetchScalarGridSpec(
            num_scalar_prefetch=0,
            grid=(B,),
            in_specs=[
                pl.BlockSpec((1, N, C), lambda b: (b, 0, 0)),      # x (one batch row)
                pl.BlockSpec((C, 3 * C), lambda b: (0, 0)),        # Wqkv^T (bf16)
                pl.BlockSpec((C, C), lambda b: (0, 0)),            # Wproj^T (bf16)
                pl.BlockSpec((1, C), lambda b: (0, 0)),            # b_proj
            ],
            out_specs=pl.BlockSpec((1, N, C), lambda b: (b, 0, 0)),
            scratch_shapes=[pltpu.VMEM((N, C), jnp.bfloat16)],     # merged-head ctx
        ),
        compiler_params=pltpu.CompilerParams(
            dimension_semantics=("parallel",),
            vmem_limit_bytes=vmem_limit),
        cost_estimate=pl.CostEstimate(flops=flops,
                                      transcendentals=transcendentals,
                                      bytes_accessed=bytes_accessed),
    )(x, w_qkv_t, w_proj_t, b_proj2)


def _reference(x, w_qkv, w_proj, b_proj, num_heads):
    """Pure-JAX (f32) transcription of the PyTorch forward (dropout p=0 -> identity)."""
    B, N, C = x.shape
    D = C // num_heads
    scale = D ** -0.5
    qkv = x @ w_qkv.T                                              # (B, N, 3C)
    qkv = qkv.reshape(B, N, 3, num_heads, D).transpose(2, 0, 3, 1, 4)
    q, k, v = qkv[0], qkv[1], qkv[2]                               # (B, H, N, D)
    attn = jnp.einsum("bhnd,bhmd->bhnm", q, k) * scale
    attn = jax.nn.softmax(attn, axis=-1)
    out = jnp.einsum("bhnm,bhmd->bhnd", attn, v)
    out = out.transpose(0, 2, 1, 3).reshape(B, N, C)
    return out @ w_proj.T + b_proj


if __name__ == "__main__":
    B, N, C, H = 2, 16, 32, 8

    key = jax.random.PRNGKey(0)
    k1, k2, k3, k4 = jax.random.split(key, 4)
    x = jax.random.normal(k1, (B, N, C), dtype=jnp.float32)
    w_qkv = jax.random.normal(k2, (3 * C, C), dtype=jnp.float32) * 0.05
    w_proj = jax.random.normal(k3, (C, C), dtype=jnp.float32) * 0.05
    b_proj = jax.random.normal(k4, (C,), dtype=jnp.float32) * 0.01

    out = attention_forward(x, w_qkv, w_proj, b_proj, num_heads=H)
    out = jax.block_until_ready(out)

    ref = _reference(x, w_qkv, w_proj, b_proj, H)
    assert out.shape == (B, N, C)
    # bf16 MXU operands + approx reciprocal -> tolerance looser than pure f32.
    assert jnp.allclose(out, ref, atol=2e-2, rtol=2e-2), "mismatch vs reference"

    print("KERNEL_OK")
</pallas_src>

<mosaic_0001>
module attributes {stable_mosaic.version = 11 : i64} {
  func.func @_attention_kernel(%arg0: i32, %arg1: memref<1x16x32xf32, #tpu.memory_space<vmem>>, %arg2: memref<32x96xbf16, #tpu.memory_space<vmem>>, %arg3: memref<32x32xbf16, #tpu.memory_space<vmem>>, %arg4: memref<1x32xf32, #tpu.memory_space<vmem>>, %arg5: memref<1x16x32xf32, #tpu.memory_space<vmem>>, %arg6: memref<16x32xbf16, #tpu.memory_space<vmem>>) attributes {dimension_semantics = [#tpu.dimension_semantics<parallel>], iteration_bounds = array<i64: 2>, scalar_prefetch = 0 : i64, scratch_operands = 1 : i64, tpu.core_type = #tpu.core_type<tc>, window_params = [{transform_indices = @transform_0, window_bounds = array<i64: 1, 16, 32>}, {pipeline_mode = #tpu.pipeline_mode<synchronous>, transform_indices = @transform_1, window_bounds = array<i64: 32, 96>}, {pipeline_mode = #tpu.pipeline_mode<synchronous>, transform_indices = @transform_2, window_bounds = array<i64: 32, 32>}, {pipeline_mode = #tpu.pipeline_mode<synchronous>, transform_indices = @transform_3, window_bounds = array<i64: 1, 32>}, {transform_indices = @transform_4, window_bounds = array<i64: 1, 16, 32>}]} {
    %c0 = arith.constant 0 : index
    %c0_0 = arith.constant 0 : index
    %c0_1 = arith.constant 0 : index
    %0 = vector.load %arg1[%c0, %c0_0, %c0_1] : memref<1x16x32xf32, #tpu.memory_space<vmem>>, vector<1x16x32xf32>
    %1 = vector.shape_cast %0 : vector<1x16x32xf32> to vector<16x32xf32>
    %2 = arith.truncf %1 : vector<16x32xf32> to vector<16x32xbf16>
    %c0_2 = arith.constant 0 : index
    %c0_3 = arith.constant 0 : index
    %3 = vector.load %arg2[%c0_2, %c0_3] : memref<32x96xbf16, #tpu.memory_space<vmem>>, vector<32x96xbf16>
    %cst = arith.constant dense<0.000000e+00> : vector<16x96xf32>
    %4 = tpu.matmul %2, %3, %cst {dimension_numbers = #tpu.dot_dimension_numbers<[1], [0], [0], [1], [0, 0, 1, 1], [], []>} : vector<16x32xbf16>, vector<32x96xbf16>, vector<16x96xf32> -> vector<16x96xf32>
    %5 = arith.truncf %4 : vector<16x96xf32> to vector<16x96xbf16>
    %6 = vector.extract_strided_slice %5 {offsets = [0, 0], sizes = [16, 4], strides = [1, 1]} : vector<16x96xbf16> to vector<16x4xbf16>
    %7 = vector.extract_strided_slice %5 {offsets = [0, 32], sizes = [16, 4], strides = [1, 1]} : vector<16x96xbf16> to vector<16x4xbf16>
    %8 = vector.extract_strided_slice %5 {offsets = [0, 64], sizes = [16, 4], strides = [1, 1]} : vector<16x96xbf16> to vector<16x4xbf16>
    "tpu.trace_start"() <{level = 10 : i32, message = "nd,md->nm"}> : () -> ()
    %cst_4 = arith.constant dense<0.000000e+00> : vector<16x16xf32>
    %9 = tpu.matmul %6, %7, %cst_4 {dimension_numbers = #tpu.dot_dimension_numbers<[1], [1], [0], [0], [0, 0, 1, 0], [], []>} : vector<16x4xbf16>, vector<16x4xbf16>, vector<16x16xf32> -> vector<16x16xf32>
    "tpu.trace_stop"() : () -> ()
    %cst_5 = arith.constant 5.000000e-01 : f32
    %10 = vector.broadcast %cst_5 : f32 to vector<16x16xf32>
    %11 = arith.mulf %9, %10 : vector<16x16xf32>
    %cst_6 = arith.constant dense<0xFF800000> : vector<16xf32>
    %12 = vector.multi_reduction <maximumf>, %11, %cst_6 [1] : vector<16x16xf32> to vector<16xf32>
    %13 = vector.shape_cast %12 : vector<16xf32> to vector<16x1xf32>
    %14 = vector.broadcast %13 : vector<16x1xf32> to vector<16x16xf32>
    %15 = arith.subf %11, %14 : vector<16x16xf32>
    %16 = math.exp %15 : vector<16x16xf32>
    %cst_7 = arith.constant dense<0.000000e+00> : vector<16xf32>
    %17 = vector.multi_reduction <add>, %16, %cst_7 [1] : vector<16x16xf32> to vector<16xf32>
    %18 = vector.shape_cast %17 : vector<16xf32> to vector<16x1xf32>
    %19 = tpu.reciprocal %18 {approx = true} : vector<16x1xf32> -> vector<16x1xf32>
    %20 = vector.broadcast %19 : vector<16x1xf32> to vector<16x16xf32>
    %21 = arith.mulf %16, %20 : vector<16x16xf32>
    %22 = arith.truncf %21 : vector<16x16xf32> to vector<16x16xbf16>
    %cst_8 = arith.constant dense<0.000000e+00> : vector<16x4xf32>
    %23 = tpu.matmul %22, %8, %cst_8 {dimension_numbers = #tpu.dot_dimension_numbers<[1], [0], [0], [1], [0, 0, 1, 1], [], []>} : vector<16x16xbf16>, vector<16x4xbf16>, vector<16x4xf32> -> vector<16x4xf32>
    %24 = arith.truncf %23 : vector<16x4xf32> to vector<16x4xbf16>
    %c0_9 = arith.constant 0 : index
    %c0_10 = arith.constant 0 : index
    %25 = vector.load %arg6[%c0_9, %c0_10] : memref<16x32xbf16, #tpu.memory_space<vmem>>, vector<16x4xbf16>
    tpu.vector_store %arg6[%c0_9, %c0_10], %24 {strides = array<i32>} : memref<16x32xbf16, #tpu.memory_space<vmem>>, vector<16x4xbf16>,
    %26 = vector.extract_strided_slice %5 {offsets = [0, 4], sizes = [16, 4], strides = [1, 1]} : vector<16x96xbf16> to vector<16x4xbf16>
    %27 = vector.extract_strided_slice %5 {offsets = [0, 36], sizes = [16, 4], strides = [1, 1]} : vector<16x96xbf16> to vector<16x4xbf16>
    %28 = vector.extract_strided_slice %5 {offsets = [0, 68], sizes = [16, 4], strides = [1, 1]} : vector<16x96xbf16> to vector<16x4xbf16>
    "tpu.trace_start"() <{level = 10 : i32, message = "nd,md->nm"}> : () -> ()
    %cst_11 = arith.constant dense<0.000000e+00> : vector<16x16xf32>
    %29 = tpu.matmul %26, %27, %cst_11 {dimension_numbers = #tpu.dot_dimension_numbers<[1], [1], [0], [0], [0, 0, 1, 0], [], []>} : vector<16x4xbf16>, vector<16x4xbf16>, vector<16x16xf32> -> vector<16x16xf32>
    "tpu.trace_stop"() : () -> ()
    %cst_12 = arith.constant 5.000000e-01 : f32
    %30 = vector.broadcast %cst_12 : f32 to vector<16x16xf32>
    %31 = arith.mulf %29, %30 : vector<16x16xf32>
    %cst_13 = arith.constant dense<0xFF800000> : vector<16xf32>
    %32 = vector.multi_reduction <maximumf>, %31, %cst_13 [1] : vector<16x16xf32> to vector<16xf32>
    %33 = vector.shape_cast %32 : vector<16xf32> to vector<16x1xf32>
    %34 = vector.broadcast %33 : vector<16x1xf32> to vector<16x16xf32>
    %35 = arith.subf %31, %34 : vector<16x16xf32>
    %36 = math.exp %35 : vector<16x16xf32>
    %cst_14 = arith.constant dense<0.000000e+00> : vector<16xf32>
    %37 = vector.multi_reduction <add>, %36, %cst_14 [1] : vector<16x16xf32> to vector<16xf32>
    %38 = vector.shape_cast %37 : vector<16xf32> to vector<16x1xf32>
    %39 = tpu.reciprocal %38 {approx = true} : vector<16x1xf32> -> vector<16x1xf32>
    %40 = vector.broadcast %39 : vector<16x1xf32> to vector<16x16xf32>
    %41 = arith.mulf %36, %40 : vector<16x16xf32>
    %42 = arith.truncf %41 : vector<16x16xf32> to vector<16x16xbf16>
    %cst_15 = arith.constant dense<0.000000e+00> : vector<16x4xf32>
    %43 = tpu.matmul %42, %28, %cst_15 {dimension_numbers = #tpu.dot_dimension_numbers<[1], [0], [0], [1], [0, 0, 1, 1], [], []>} : vector<16x16xbf16>, vector<16x4xbf16>, vector<16x4xf32> -> vector<16x4xf32>
    %44 = arith.truncf %43 : vector<16x4xf32> to vector<16x4xbf16>
    %c0_16 = arith.constant 0 : index
    %c4 = arith.constant 4 : index
    %45 = vector.load %arg6[%c0_16, %c4] : memref<16x32xbf16, #tpu.memory_space<vmem>>, vector<16x4xbf16>
    tpu.vector_store %arg6[%c0_16, %c4], %44 {strides = array<i32>} : memref<16x32xbf16, #tpu.memory_space<vmem>>, vector<16x4xbf16>,
    %46 = vector.extract_strided_slice %5 {offsets = [0, 8], sizes = [16, 4], strides = [1, 1]} : vector<16x96xbf16> to vector<16x4xbf16>
    %47 = vector.extract_strided_slice %5 {offsets = [0, 40], sizes = [16, 4], strides = [1, 1]} : vector<16x96xbf16> to vector<16x4xbf16>
    %48 = vector.extract_strided_slice %5 {offsets = [0, 72], sizes = [16, 4], strides = [1, 1]} : vector<16x96xbf16> to vector<16x4xbf16>
    "tpu.trace_start"() <{level = 10 : i32, message = "nd,md->nm"}> : () -> ()
    %cst_17 = arith.constant dense<0.000000e+00> : vector<16x16xf32>
    %49 = tpu.matmul %46, %47, %cst_17 {dimension_numbers = #tpu.dot_dimension_numbers<[1], [1], [0], [0], [0, 0, 1, 0], [], []>} : vector<16x4xbf16>, vector<16x4xbf16>, vector<16x16xf32> -> vector<16x16xf32>
    "tpu.trace_stop"() : () -> ()
    %cst_18 = arith.constant 5.000000e-01 : f32
    %50 = vector.broadcast %cst_18 : f32 to vector<16x16xf32>
    %51 = arith.mulf %49, %50 : vector<16x16xf32>
    %cst_19 = arith.constant dense<0xFF800000> : vector<16xf32>
    %52 = vector.multi_reduction <maximumf>, %51, %cst_19 [1] : vector<16x16xf32> to vector<16xf32>
    %53 = vector.shape_cast %52 : vector<16xf32> to vector<16x1xf32>
    %54 = vector.broadcast %53 : vector<16x1xf32> to vector<16x16xf32>
    %55 = arith.subf %51, %54 : vector<16x16xf32>
    %56 = math.exp %55 : vector<16x16xf32>
    %cst_20 = arith.constant dense<0.000000e+00> : vector<16xf32>
    %57 = vector.multi_reduction <add>, %56, %cst_20 [1] : vector<16x16xf32> to vector<16xf32>
    %58 = vector.shape_cast %57 : vector<16xf32> to vector<16x1xf32>
    %59 = tpu.reciprocal %58 {approx = true} : vector<16x1xf32> -> vector<16x1xf32>
    %60 = vector.broadcast %59 : vector<16x1xf32> to vector<16x16xf32>
    %61 = arith.mulf %56, %60 : vector<16x16xf32>
    %62 = arith.truncf %61 : vector<16x16xf32> to vector<16x16xbf16>
    %cst_21 = arith.constant dense<0.000000e+00> : vector<16x4xf32>
    %63 = tpu.matmul %62, %48, %cst_21 {dimension_numbers = #tpu.dot_dimension_numbers<[1], [0], [0], [1], [0, 0, 1, 1], [], []>} : vector<16x16xbf16>, vector<16x4xbf16>, vector<16x4xf32> -> vector<16x4xf32>
    %64 = arith.truncf %63 : vector<16x4xf32> to vector<16x4xbf16>
    %c0_22 = arith.constant 0 : index
    %c8 = arith.constant 8 : index
    %65 = vector.load %arg6[%c0_22, %c8] : memref<16x32xbf16, #tpu.memory_space<vmem>>, vector<16x4xbf16>
    tpu.vector_store %arg6[%c0_22, %c8], %64 {strides = array<i32>} : memref<16x32xbf16, #tpu.memory_space<vmem>>, vector<16x4xbf16>,
    %66 = vector.extract_strided_slice %5 {offsets = [0, 12], sizes = [16, 4], strides = [1, 1]} : vector<16x96xbf16> to vector<16x4xbf16>
    %67 = vector.extract_strided_slice %5 {offsets = [0, 44], sizes = [16, 4], strides = [1, 1]} : vector<16x96xbf16> to vector<16x4xbf16>
    %68 = vector.extract_strided_slice %5 {offsets = [0, 76], sizes = [16, 4], strides = [1, 1]} : vector<16x96xbf16> to vector<16x4xbf16>
    "tpu.trace_start"() <{level = 10 : i32, message = "nd,md->nm"}> : () -> ()
    %cst_23 = arith.constant dense<0.000000e+00> : vector<16x16xf32>
    %69 = tpu.matmul %66, %67, %cst_23 {dimension_numbers = #tpu.dot_dimension_numbers<[1], [1], [0], [0], [0, 0, 1, 0], [], []>} : vector<16x4xbf16>, vector<16x4xbf16>, vector<16x16xf32> -> vector<16x16xf32>
    "tpu.trace_stop"() : () -> ()
    %cst_24 = arith.constant 5.000000e-01 : f32
    %70 = vector.broadcast %cst_24 : f32 to vector<16x16xf32>
    %71 = arith.mulf %69, %70 : vector<16x16xf32>
    %cst_25 = arith.constant dense<0xFF800000> : vector<16xf32>
    %72 = vector.multi_reduction <maximumf>, %71, %cst_25 [1] : vector<16x16xf32> to vector<16xf32>
    %73 = vector.shape_cast %72 : vector<16xf32> to vector<16x1xf32>
    %74 = vector.broadcast %73 : vector<16x1xf32> to vector<16x16xf32>
    %75 = arith.subf %71, %74 : vector<16x16xf32>
    %76 = math.exp %75 : vector<16x16xf32>
    %cst_26 = arith.constant dense<0.000000e+00> : vector<16xf32>
    %77 = vector.multi_reduction <add>, %76, %cst_26 [1] : vector<16x16xf32> to vector<16xf32>
    %78 = vector.shape_cast %77 : vector<16xf32> to vector<16x1xf32>
    %79 = tpu.reciprocal %78 {approx = true} : vector<16x1xf32> -> vector<16x1xf32>
    %80 = vector.broadcast %79 : vector<16x1xf32> to vector<16x16xf32>
    %81 = arith.mulf %76, %80 : vector<16x16xf32>
    %82 = arith.truncf %81 : vector<16x16xf32> to vector<16x16xbf16>
    %cst_27 = arith.constant dense<0.000000e+00> : vector<16x4xf32>
    %83 = tpu.matmul %82, %68, %cst_27 {dimension_numbers = #tpu.dot_dimension_numbers<[1], [0], [0], [1], [0, 0, 1, 1], [], []>} : vector<16x16xbf16>, vector<16x4xbf16>, vector<16x4xf32> -> vector<16x4xf32>
    %84 = arith.truncf %83 : vector<16x4xf32> to vector<16x4xbf16>
    %c0_28 = arith.constant 0 : index
    %c12 = arith.constant 12 : index
    %85 = vector.load %arg6[%c0_28, %c12] : memref<16x32xbf16, #tpu.memory_space<vmem>>, vector<16x4xbf16>
    tpu.vector_store %arg6[%c0_28, %c12], %84 {strides = array<i32>} : memref<16x32xbf16, #tpu.memory_space<vmem>>, vector<16x4xbf16>,
    %86 = vector.extract_strided_slice %5 {offsets = [0, 16], sizes = [16, 4], strides = [1, 1]} : vector<16x96xbf16> to vector<16x4xbf16>
    %87 = vector.extract_strided_slice %5 {offsets = [0, 48], sizes = [16, 4], strides = [1, 1]} : vector<16x96xbf16> to vector<16x4xbf16>
    %88 = vector.extract_strided_slice %5 {offsets = [0, 80], sizes = [16, 4], strides = [1, 1]} : vector<16x96xbf16> to vector<16x4xbf16>
    "tpu.trace_start"() <{level = 10 : i32, message = "nd,md->nm"}> : () -> ()
    %cst_29 = arith.constant dense<0.000000e+00> : vector<16x16xf32>
    %89 = tpu.matmul %86, %87, %cst_29 {dimension_numbers = #tpu.dot_dimension_numbers<[1], [1], [0], [0], [0, 0, 1, 0], [], []>} : vector<16x4xbf16>, vector<16x4xbf16>, vector<16x16xf32> -> vector<16x16xf32>
    "tpu.trace_stop"() : () -> ()
    %cst_30 = arith.constant 5.000000e-01 : f32
    %90 = vector.broadcast %cst_30 : f32 to vector<16x16xf32>
    %91 = arith.mulf %89, %90 : vector<16x16xf32>
    %cst_31 = arith.constant dense<0xFF800000> : vector<16xf32>
    %92 = vector.multi_reduction <maximumf>, %91, %cst_31 [1] : vector<16x16xf32> to vector<16xf32>
    %93 = vector.shape_cast %92 : vector<16xf32> to vector<16x1xf32>
    %94 = vector.broadcast %93 : vector<16x1xf32> to vector<16x16xf32>
    %95 = arith.subf %91, %94 : vector<16x16xf32>
    %96 = math.exp %95 : vector<16x16xf32>
    %cst_32 = arith.constant dense<0.000000e+00> : vector<16xf32>
    %97 = vector.multi_reduction <add>, %96, %cst_32 [1] : vector<16x16xf32> to vector<16xf32>
    %98 = vector.shape_cast %97 : vector<16xf32> to vector<16x1xf32>
    %99 = tpu.reciprocal %98 {approx = true} : vector<16x1xf32> -> vector<16x1xf32>
    %100 = vector.broadcast %99 : vector<16x1xf32> to vector<16x16xf32>
    %101 = arith.mulf %96, %100 : vector<16x16xf32>
    %102 = arith.truncf %101 : vector<16x16xf32> to vector<16x16xbf16>
    %cst_33 = arith.constant dense<0.000000e+00> : vector<16x4xf32>
    %103 = tpu.matmul %102, %88, %cst_33 {dimension_numbers = #tpu.dot_dimension_numbers<[1], [0], [0], [1], [0, 0, 1, 1], [], []>} : vector<16x16xbf16>, vector<16x4xbf16>, vector<16x4xf32> -> vector<16x4xf32>
    %104 = arith.truncf %103 : vector<16x4xf32> to vector<16x4xbf16>
    %c0_34 = arith.constant 0 : index
    %c16 = arith.constant 16 : index
    %105 = vector.load %arg6[%c0_34, %c16] : memref<16x32xbf16, #tpu.memory_space<vmem>>, vector<16x4xbf16>
    tpu.vector_store %arg6[%c0_34, %c16], %104 {strides = array<i32>} : memref<16x32xbf16, #tpu.memory_space<vmem>>, vector<16x4xbf16>,
    %106 = vector.extract_strided_slice %5 {offsets = [0, 20], sizes = [16, 4], strides = [1, 1]} : vector<16x96xbf16> to vector<16x4xbf16>
    %107 = vector.extract_strided_slice %5 {offsets = [0, 52], sizes = [16, 4], strides = [1, 1]} : vector<16x96xbf16> to vector<16x4xbf16>
    %108 = vector.extract_strided_slice %5 {offsets = [0, 84], sizes = [16, 4], strides = [1, 1]} : vector<16x96xbf16> to vector<16x4xbf16>
    "tpu.trace_start"() <{level = 10 : i32, message = "nd,md->nm"}> : () -> ()
    %cst_35 = arith.constant dense<0.000000e+00> : vector<16x16xf32>
    %109 = tpu.matmul %106, %107, %cst_35 {dimension_numbers = #tpu.dot_dimension_numbers<[1], [1], [0], [0], [0, 0, 1, 0], [], []>} : vector<16x4xbf16>, vector<16x4xbf16>, vector<16x16xf32> -> vector<16x16xf32>
    "tpu.trace_stop"() : () -> ()
    %cst_36 = arith.constant 5.000000e-01 : f32
    %110 = vector.broadcast %cst_36 : f32 to vector<16x16xf32>
    %111 = arith.mulf %109, %110 : vector<16x16xf32>
    %cst_37 = arith.constant dense<0xFF800000> : vector<16xf32>
    %112 = vector.multi_reduction <maximumf>, %111, %cst_37 [1] : vector<16x16xf32> to vector<16xf32>
    %113 = vector.shape_cast %112 : vector<16xf32> to vector<16x1xf32>
    %114 = vector.broadcast %113 : vector<16x1xf32> to vector<16x16xf32>
    %115 = arith.subf %111, %114 : vector<16x16xf32>
    %116 = math.exp %115 : vector<16x16xf32>
    %cst_38 = arith.constant dense<0.000000e+00> : vector<16xf32>
    %117 = vector.multi_reduction <add>, %116, %cst_38 [1] : vector<16x16xf32> to vector<16xf32>
    %118 = vector.shape_cast %117 : vector<16xf32> to vector<16x1xf32>
    %119 = tpu.reciprocal %118 {approx = true} : vector<16x1xf32> -> vector<16x1xf32>
    %120 = vector.broadcast %119 : vector<16x1xf32> to vector<16x16xf32>
    %121 = arith.mulf %116, %120 : vector<16x16xf32>
    %122 = arith.truncf %121 : vector<16x16xf32> to vector<16x16xbf16>
    %cst_39 = arith.constant dense<0.000000e+00> : vector<16x4xf32>
    %123 = tpu.matmul %122, %108, %cst_39 {dimension_numbers = #tpu.dot_dimension_numbers<[1], [0], [0], [1], [0, 0, 1, 1], [], []>} : vector<16x16xbf16>, vector<16x4xbf16>, vector<16x4xf32> -> vector<16x4xf32>
    %124 = arith.truncf %123 : vector<16x4xf32> to vector<16x4xbf16>
    %c0_40 = arith.constant 0 : index
    %c20 = arith.constant 20 : index
    %125 = vector.load %arg6[%c0_40, %c20] : memref<16x32xbf16, #tpu.memory_space<vmem>>, vector<16x4xbf16>
    tpu.vector_store %arg6[%c0_40, %c20], %124 {strides = array<i32>} : memref<16x32xbf16, #tpu.memory_space<vmem>>, vector<16x4xbf16>,
    %126 = vector.extract_strided_slice %5 {offsets = [0, 24], sizes = [16, 4], strides = [1, 1]} : vector<16x96xbf16> to vector<16x4xbf16>
    %127 = vector.extract_strided_slice %5 {offsets = [0, 56], sizes = [16, 4], strides = [1, 1]} : vector<16x96xbf16> to vector<16x4xbf16>
    %128 = vector.extract_strided_slice %5 {offsets = [0, 88], sizes = [16, 4], strides = [1, 1]} : vector<16x96xbf16> to vector<16x4xbf16>
    "tpu.trace_start"() <{level = 10 : i32, message = "nd,md->nm"}> : () -> ()
    %cst_41 = arith.constant dense<0.000000e+00> : vector<16x16xf32>
    %129 = tpu.matmul %126, %127, %cst_41 {dimension_numbers = #tpu.dot_dimension_numbers<[1], [1], [0], [0], [0, 0, 1, 0], [], []>} : vector<16x4xbf16>, vector<16x4xbf16>, vector<16x16xf32> -> vector<16x16xf32>
    "tpu.trace_stop"() : () -> ()
    %cst_42 = arith.constant 5.000000e-01 : f32
    %130 = vector.broadcast %cst_42 : f32 to vector<16x16xf32>
    %131 = arith.mulf %129, %130 : vector<16x16xf32>
    %cst_43 = arith.constant dense<0xFF800000> : vector<16xf32>
    %132 = vector.multi_reduction <maximumf>, %131, %cst_43 [1] : vector<16x16xf32> to vector<16xf32>
    %133 = vector.shape_cast %132 : vector<16xf32> to vector<16x1xf32>
    %134 = vector.broadcast %133 : vector<16x1xf32> to vector<16x16xf32>
    %135 = arith.subf %131, %134 : vector<16x16xf32>
    %136 = math.exp %135 : vector<16x16xf32>
    %cst_44 = arith.constant dense<0.000000e+00> : vector<16xf32>
    %137 = vector.multi_reduction <add>, %136, %cst_44 [1] : vector<16x16xf32> to vector<16xf32>
    %138 = vector.shape_cast %137 : vector<16xf32> to vector<16x1xf32>
    %139 = tpu.reciprocal %138 {approx = true} : vector<16x1xf32> -> vector<16x1xf32>
    %140 = vector.broadcast %139 : vector<16x1xf32> to vector<16x16xf32>
    %141 = arith.mulf %136, %140 : vector<16x16xf32>
    %142 = arith.truncf %141 : vector<16x16xf32> to vector<16x16xbf16>
    %cst_45 = arith.constant dense<0.000000e+00> : vector<16x4xf32>
    %143 = tpu.matmul %142, %128, %cst_45 {dimension_numbers = #tpu.dot_dimension_numbers<[1], [0], [0], [1], [0, 0, 1, 1], [], []>} : vector<16x16xbf16>, vector<16x4xbf16>, vector<16x4xf32> -> vector<16x4xf32>
    %144 = arith.truncf %143 : vector<16x4xf32> to vector<16x4xbf16>
    %c0_46 = arith.constant 0 : index
    %c24 = arith.constant 24 : index
    %145 = vector.load %arg6[%c0_46, %c24] : memref<16x32xbf16, #tpu.memory_space<vmem>>, vector<16x4xbf16>
    tpu.vector_store %arg6[%c0_46, %c24], %144 {strides = array<i32>} : memref<16x32xbf16, #tpu.memory_space<vmem>>, vector<16x4xbf16>,
    %146 = vector.extract_strided_slice %5 {offsets = [0, 28], sizes = [16, 4], strides = [1, 1]} : vector<16x96xbf16> to vector<16x4xbf16>
    %147 = vector.extract_strided_slice %5 {offsets = [0, 60], sizes = [16, 4], strides = [1, 1]} : vector<16x96xbf16> to vector<16x4xbf16>
    %148 = vector.extract_strided_slice %5 {offsets = [0, 92], sizes = [16, 4], strides = [1, 1]} : vector<16x96xbf16> to vector<16x4xbf16>
    "tpu.trace_start"() <{level = 10 : i32, message = "nd,md->nm"}> : () -> ()
    %cst_47 = arith.constant dense<0.000000e+00> : vector<16x16xf32>
    %149 = tpu.matmul %146, %147, %cst_47 {dimension_numbers = #tpu.dot_dimension_numbers<[1], [1], [0], [0], [0, 0, 1, 0], [], []>} : vector<16x4xbf16>, vector<16x4xbf16>, vector<16x16xf32> -> vector<16x16xf32>
    "tpu.trace_stop"() : () -> ()
    %cst_48 = arith.constant 5.000000e-01 : f32
    %150 = vector.broadcast %cst_48 : f32 to vector<16x16xf32>
    %151 = arith.mulf %149, %150 : vector<16x16xf32>
    %cst_49 = arith.constant dense<0xFF800000> : vector<16xf32>
    %152 = vector.multi_reduction <maximumf>, %151, %cst_49 [1] : vector<16x16xf32> to vector<16xf32>
    %153 = vector.shape_cast %152 : vector<16xf32> to vector<16x1xf32>
    %154 = vector.broadcast %153 : vector<16x1xf32> to vector<16x16xf32>
    %155 = arith.subf %151, %154 : vector<16x16xf32>
    %156 = math.exp %155 : vector<16x16xf32>
    %cst_50 = arith.constant dense<0.000000e+00> : vector<16xf32>
    %157 = vector.multi_reduction <add>, %156, %cst_50 [1] : vector<16x16xf32> to vector<16xf32>
    %158 = vector.shape_cast %157 : vector<16xf32> to vector<16x1xf32>
    %159 = tpu.reciprocal %158 {approx = true} : vector<16x1xf32> -> vector<16x1xf32>
    %160 = vector.broadcast %159 : vector<16x1xf32> to vector<16x16xf32>
    %161 = arith.mulf %156, %160 : vector<16x16xf32>
    %162 = arith.truncf %161 : vector<16x16xf32> to vector<16x16xbf16>
    %cst_51 = arith.constant dense<0.000000e+00> : vector<16x4xf32>
    %163 = tpu.matmul %162, %148, %cst_51 {dimension_numbers = #tpu.dot_dimension_numbers<[1], [0], [0], [1], [0, 0, 1, 1], [], []>} : vector<16x16xbf16>, vector<16x4xbf16>, vector<16x4xf32> -> vector<16x4xf32>
    %164 = arith.truncf %163 : vector<16x4xf32> to vector<16x4xbf16>
    %c0_52 = arith.constant 0 : index
    %c28 = arith.constant 28 : index
    %165 = vector.load %arg6[%c0_52, %c28] : memref<16x32xbf16, #tpu.memory_space<vmem>>, vector<16x4xbf16>
    tpu.vector_store %arg6[%c0_52, %c28], %164 {strides = array<i32>} : memref<16x32xbf16, #tpu.memory_space<vmem>>, vector<16x4xbf16>,
    %c0_53 = arith.constant 0 : index
    %c0_54 = arith.constant 0 : index
    %166 = vector.load %arg6[%c0_53, %c0_54] : memref<16x32xbf16, #tpu.memory_space<vmem>>, vector<16x32xbf16>
    %c0_55 = arith.constant 0 : index
    %c0_56 = arith.constant 0 : index
    %167 = vector.load %arg3[%c0_55, %c0_56] : memref<32x32xbf16, #tpu.memory_space<vmem>>, vector<32x32xbf16>
    %cst_57 = arith.constant dense<0.000000e+00> : vector<16x32xf32>
    %168 = tpu.matmul %166, %167, %cst_57 {dimension_numbers = #tpu.dot_dimension_numbers<[1], [0], [0], [1], [0, 0, 1, 1], [], []>} : vector<16x32xbf16>, vector<32x32xbf16>, vector<16x32xf32> -> vector<16x32xf32>
    %c0_58 = arith.constant 0 : index
    %c0_59 = arith.constant 0 : index
    %169 = vector.load %arg4[%c0_58, %c0_59] : memref<1x32xf32, #tpu.memory_space<vmem>>, vector<1x32xf32>
    %170 = vector.broadcast %169 : vector<1x32xf32> to vector<16x32xf32>
    %171 = arith.addf %168, %170 : vector<16x32xf32>
    %c0_60 = arith.constant 0 : index
    %c0_61 = arith.constant 0 : index
    %c0_62 = arith.constant 0 : index
    %172 = vector.load %arg5[%c0_60, %c0_61, %c0_62] : memref<1x16x32xf32, #tpu.memory_space<vmem>>, vector<1x16x32xf32>
    %173 = vector.shape_cast %172 : vector<1x16x32xf32> to vector<16x32xf32>
    %174 = vector.shape_cast %171 : vector<16x32xf32> to vector<1x16x32xf32>
    tpu.vector_store %arg5[%c0_60, %c0_61, %c0_62], %174 {strides = array<i32>} : memref<1x16x32xf32, #tpu.memory_space<vmem>>, vector<1x16x32xf32>,
    return
  }
  func.func @transform_0(%arg0: i32) -> (i32, i32, i32) {
    %c0_i32 = arith.constant 0 : i32
    %c0_i32_0 = arith.constant 0 : i32
    %c0_i32_1 = arith.constant 0 : i32
    return %arg0, %c0_i32, %c0_i32_0 : i32, i32, i32
  }
  func.func @transform_1(%arg0: i32) -> (i32, i32) {
    %c0_i32 = arith.constant 0 : i32
    %c0_i32_0 = arith.constant 0 : i32
    %c0_i32_1 = arith.constant 0 : i32
    return %c0_i32, %c0_i32_0 : i32, i32
  }
  func.func @transform_2(%arg0: i32) -> (i32, i32) {
    %c0_i32 = arith.constant 0 : i32
    %c0_i32_0 = arith.constant 0 : i32
    %c0_i32_1 = arith.constant 0 : i32
    return %c0_i32, %c0_i32_0 : i32, i32
  }
  func.func @transform_3(%arg0: i32) -> (i32, i32) {
    %c0_i32 = arith.constant 0 : i32
    %c0_i32_0 = arith.constant 0 : i32
    %c0_i32_1 = arith.constant 0 : i32
    return %c0_i32, %c0_i32_0 : i32, i32
  }
  func.func @transform_4(%arg0: i32) -> (i32, i32, i32) {
    %c0_i32 = arith.constant 0 : i32
    %c0_i32_0 = arith.constant 0 : i32
    %c0_i32_1 = arith.constant 0 : i32
    return %arg0, %c0_i32, %c0_i32_0 : i32, i32, i32
  }
}

</mosaic_0001>

<llo_original>
// kernel: tpu_custom_call.1
$region0: #{tpu_custom_call.1}
  #allocation0 [shape = 'u32[]', space=smem, size = 0x4, offset = 0x4, fixed_abs, tag = 'smem constant byte address 0x4 - core index']
  #allocation1 [shape = 'u32[144,128]{1,0:T(1,128)}', space=vmem, size = 0x12000, scoped, tag = 'internal scratch']
  #allocation2 [shape = 'bf16[16,32]{1,0:T(16,128)(2,1)}', space=vmem, size = 0x1000, scoped, tag = 'scratch operand']
  %s0 = inlined_call_operand.hbm [shape: f32[2,16,32], index: 0, kind: input, shape index: {}]
  %s1 = inlined_call_operand.hbm [shape: bf16[32,96], index: 1, kind: input, shape index: {}]
  %s2 = inlined_call_operand.hbm [shape: bf16[32,32], index: 2, kind: input, shape index: {}]
  %s3 = inlined_call_operand.vmem [shape: f32[1,32], index: 3, kind: input, shape index: {}]
  %s4 = inlined_call_operand.hbm [shape: f32[2,16,32], index: 4, kind: output, shape index: {}]
  %s5 = sld [smem:[#allocation0]]
  $region61: #{tpu_custom_call.1} parent=0
    _
  %s7 = ssub.s32 1, %s5
  %s8 = scalar_select 0, %s7, %s5
  $region1: #{tpu_custom_call.1} parent=0
    #allocation3 [shape = 'u8[16384]{0}', space=vmem, size = 0x4000, scoped, tag = 'input window, operand 0']
    #allocation4 [shape = 's32[2]{0}', space=sflag, size = 0x8, scoped, tag = 'scoped memory for tpu_custom_call.1']
    #allocation5 [shape = 's32[2]{0}', space=sflag, size = 0x8, scoped, tag = 'scoped memory for tpu_custom_call.1']
    #allocation6 [shape = 'u8[8192]{0}', space=vmem, size = 0x2000, scoped, tag = 'input window, operand 1, single buffered']
    #allocation7 [shape = 's32[1]{0}', space=sflag, size = 0x4, scoped, tag = 'scoped memory for tpu_custom_call.1']
    #allocation8 [shape = 'u8[8192]{0}', space=vmem, size = 0x2000, scoped, tag = 'input window, operand 2, single buffered']
    #allocation9 [shape = 'u8[16384]{0}', space=vmem, size = 0x4000, scoped, tag = 'output window, operand 0']
    %9 = vsyncpa [#allocation4], 0
    %s10 = scalar_lea.sflag [#allocation4], 1
    %11 = vsyncpa %s10, 0
    %12 = vsyncpa [#allocation7], 0
    %13 = vsyncpa [#allocation5], 0
    %s14 = scalar_lea.sflag [#allocation5], 1
    %15 = vsyncpa %s14, 0
    loop: start=0, step=1, limit=4
    $region2: #{tpu_custom_call.1} parent=1 // loop_pre_header
      _
    $region3: #{tpu_custom_call.1} parent=1 // loop_header
      %s17 = sphi 0, %s21
      %p18 = scmp.ge.s32.totalorder %s17, 4
      %s27 = sphi 0, %s29
      %s30 = sphi 0, %s27
      %s31 = sphi 0, %s30
      %s47 = sphi 0, %s31
      %s51 = sphi 0, %s51
      %s53 = sphi 0, %s51
      %s54 = sphi 0, %s53
      %s68 = sphi 0, %s54
      %s72 = sphi 0, %s72
      %s74 = sphi 0, %s72
      %s75 = sphi 0, %s74
      %s89 = sphi 0, %s75
      %s93 = sphi 0, %s93
      %s95 = sphi 0, %s93
      %s96 = sphi 0, %s95
      %s110 = sphi 0, %s96
      %s116 = sphi 0, %s118
      %s119 = sphi 0, %s116
      %s120 = sphi 0, %s119
      %s136 = sphi 0, %s120
    $region4: #{tpu_custom_call.1} parent=1 // loop_header_branch
      %20 = sbr.rel (%p18) target = $region8
    $region5: #{tpu_custom_call.1} parent=1 // loop_body
      %s22 = ssub.s32 %s17, 1
      %s23 = ssub.s32 %s17, 2
      %s24 = sadd.s32 %s17, 1
      %s25 = ssub.s32 %s17, %s24
      %p26 = scmp.eq.s32.totalorder %s25, 0
      %s28 = sadd.s32 %s27, 1
      %s29 = scalar_select %p26, %s27, %s28
      %p32 = pneg %p26
      %p33 = scmp.eq.s32.totalorder %s17, 1
      %p34 = por %p32, %p33
      %p35 = scmp.ne.s32.totalorder %s27, %s30
      %p36 = scmp.eq.s32.totalorder %s17, 0
      %p37 = por %p35, %p36
      %p38 = scmp.ne.s32.totalorder %s27, %s30
      %p39 = scmp.eq.s32.totalorder %s22, 1
      %p40 = por %p38, %p39
      %p41 = scmp.ne.s32.totalorder %s30, %s31
      %p42 = scmp.eq.s32.totalorder %s22, 0
      %p43 = por %p41, %p42
      %p44 = scmp.ne.s32.totalorder %s30, %s31
      %p45 = scmp.eq.s32.totalorder %s23, 1
      %p46 = por %p44, %p45
      %p48 = scmp.ne.s32.totalorder %s31, %s47
      %p49 = scmp.eq.s32.totalorder %s23, 0
      %p50 = por %p48, %p49
      %s52 = sadd.s32 %s51, 1
      %p55 = scmp.eq.s32.totalorder %s17, 1
      %p56 = scmp.ne.s32.totalorder %s51, %s53
      %p57 = scmp.eq.s32.totalorder %s17, 0
      %p58 = por %p56, %p57
      %p59 = scmp.ne.s32.totalorder %s51, %s53
      %p60 = scmp.eq.s32.totalorder %s22, 1
      %p61 = por %p59, %p60
      %p62 = scmp.ne.s32.totalorder %s53, %s54
      %p63 = scmp.eq.s32.totalorder %s22, 0
      %p64 = por %p62, %p63
      %p65 = scmp.ne.s32.totalorder %s53, %s54
      %p66 = scmp.eq.s32.totalorder %s23, 1
      %p67 = por %p65, %p66
      %p69 = scmp.ne.s32.totalorder %s54, %s68
      %p70 = scmp.eq.s32.totalorder %s23, 0
      %p71 = por %p69, %p70
      %s73 = sadd.s32 %s72, 1
      %p76 = scmp.eq.s32.totalorder %s17, 1
      %p77 = scmp.ne.s32.totalorder %s72, %s74
      %p78 = scmp.eq.s32.totalorder %s17, 0
      %p79 = por %p77, %p78
      %p80 = scmp.ne.s32.totalorder %s72, %s74
      %p81 = scmp.eq.s32.totalorder %s22, 1
      %p82 = por %p80, %p81
      %p83 = scmp.ne.s32.totalorder %s74, %s75
      %p84 = scmp.eq.s32.totalorder %s22, 0
      %p85 = por %p83, %p84
      %p86 = scmp.ne.s32.totalorder %s74, %s75
      %p87 = scmp.eq.s32.totalorder %s23, 1
      %p88 = por %p86, %p87
      %p90 = scmp.ne.s32.totalorder %s75, %s89
      %p91 = scmp.eq.s32.totalorder %s23, 0
      %p92 = por %p90, %p91
      %s94 = sadd.s32 %s93, 1
      %p97 = scmp.eq.s32.totalorder %s17, 1
      %p98 = scmp.ne.s32.totalorder %s93, %s95
      %p99 = scmp.eq.s32.totalorder %s17, 0
      %p100 = por %p98, %p99
      %p101 = scmp.ne.s32.totalorder %s93, %s95
      %p102 = scmp.eq.s32.totalorder %s22, 1
      %p103 = por %p101, %p102
      %p104 = scmp.ne.s32.totalorder %s95, %s96
      %p105 = scmp.eq.s32.totalorder %s22, 0
      %p106 = por %p104, %p105
      %p107 = scmp.ne.s32.totalorder %s95, %s96
      %p108 = scmp.eq.s32.totalorder %s23, 1
      %p109 = por %p107, %p108
      %p111 = scmp.ne.s32.totalorder %s96, %s110
      %p112 = scmp.eq.s32.totalorder %s23, 0
      %p113 = por %p111, %p112
      %s114 = ssub.s32 %s17, %s24
      %p115 = scmp.eq.s32.totalorder %s114, 0
      %s117 = sadd.s32 %s116, 1
      %s118 = scalar_select %p115, %s116, %s117
      %p121 = pneg %p115
      %p122 = scmp.eq.s32.totalorder %s17, 1
      %p123 = por %p121, %p122
      %p124 = scmp.ne.s32.totalorder %s116, %s119
      %p125 = scmp.eq.s32.totalorder %s17, 0
      %p126 = por %p124, %p125
      %p127 = scmp.ne.s32.totalorder %s116, %s119
      %p128 = scmp.eq.s32.totalorder %s22, 1
      %p129 = por %p127, %p128
      %p130 = scmp.ne.s32.totalorder %s119, %s120
      %p131 = scmp.eq.s32.totalorder %s22, 0
      %p132 = por %p130, %p131
      %p133 = scmp.ne.s32.totalorder %s119, %s120
      %p134 = scmp.eq.s32.totalorder %s23, 1
      %p135 = por %p133, %p134
      %p137 = scmp.ne.s32.totalorder %s120, %s136
      %p138 = scmp.eq.s32.totalorder %s23, 0
      %p139 = por %p137, %p138
      %p140 = scmp.le.s32.totalorder 1, %s17
      %p141 = scmp.lt.s32.totalorder %s17, 3
      %p142 = pnand %p140, %p141
      %p143 = pneg %p142
      // Predicated region
      $region9: #{tpu_custom_call.1} parent=5 // pred_check
        _
      $region10: #{tpu_custom_call.1} parent=5 // pred_check_branch
        %145 = sbr.rel (%p142) target = $region12
      $region11: #{tpu_custom_call.1} parent=5 // pred_region
        %s146 = ssub.s32 %s17, 1
        // Predicated region
        $region13: #{tpu_custom_call.1} parent=11 // pred_check
          %p147 = pneg %p64
        $region14: #{tpu_custom_call.1} parent=11 // pred_check_branch
          %149 = sbr.rel (%p147) target = $region16
        $region15: #{tpu_custom_call.1} parent=11 // pred_region
          %s151 = ssub.s32 256, 256
          %152 = vsyncadd [#allocation7], %s151
          %s153 = sshll.u32 [#allocation6], 4
          %s154 = int_to_ptr.vmem [resolvable:$true] %s153
          %159 = dma.hbm_to_vmem [thread:$0]  %s1, 256, %s154, [#allocation7], 64, 64, 4
        $region16: #{tpu_custom_call.1} parent=11 // pred_fallthru
          _
        // Predicated region
        $region17: #{tpu_custom_call.1} parent=11 // pred_check
          %p160 = pneg %p85
        $region18: #{tpu_custom_call.1} parent=11 // pred_check_branch
          %162 = sbr.rel (%p160) target = $region20
        $region19: #{tpu_custom_call.1} parent=11 // pred_region
          %s164 = ssub.s32 256, 256
          %165 = vsyncadd [#allocation7], %s164
          %s166 = sshll.u32 [#allocation8], 4
          %s167 = int_to_ptr.vmem [resolvable:$true] %s166
          %172 = dma.hbm_to_vmem [thread:$0]  %s2, 256, %s167, [#allocation7], 64, 64, 4
        $region20: #{tpu_custom_call.1} parent=11 // pred_fallthru
          _
        // Predicated region
        $region21: #{tpu_custom_call.1} parent=11 // pred_check
          %p173 = pneg %p106
        $region22: #{tpu_custom_call.1} parent=11 // pred_check_branch
          %175 = sbr.rel (%p173) target = $region24
        $region23: #{tpu_custom_call.1} parent=11 // pred_region
          _
        $region24: #{tpu_custom_call.1} parent=11 // pred_fallthru
          _
      $region12: #{tpu_custom_call.1} parent=5 // pred_fallthru
        _
      %p176 = scmp.lt.s32.totalorder %s17, 2
      // Predicated region
      $region25: #{tpu_custom_call.1} parent=5 // pred_check
        %p177 = pneg %p176
      $region26: #{tpu_custom_call.1} parent=5 // pred_check_branch
        %179 = sbr.rel (%p177) target = $region28
      $region27: #{tpu_custom_call.1} parent=5 // pred_region
        // Predicated region
        $region29: #{tpu_custom_call.1} parent=27 // pred_check
          %p180 = pneg %p37
        $region30: #{tpu_custom_call.1} parent=27 // pred_check_branch
          %182 = sbr.rel (%p180) target = $region32
        $region31: #{tpu_custom_call.1} parent=27 // pred_region
          %s183 = sand.u32 %s27, 1
          %s184 = scalar_lea.sflag [#allocation4], %s183
          %s185 = sand.u32 %s27, 1
          %s186 = smul.addr %s185, 16
          %s187 = scalar_lea.vmem [#allocation3], %s186
          %s189 = ssub.s32 256, 256
          %190 = vsyncadd %s184, %s189
          %s191 = smul.addr %s17, 2
          %s192 = smul.addr %s191, 128
          %s193 = scalar_lea.hbm %s0, %s192
          %s194 = sshll.u32 %s187, 4
          %s195 = int_to_ptr.vmem [resolvable:$true] %s194
          %200 = dma.hbm_to_vmem [thread:$0]  %s193, 256, %s195, %s184, 128, 128, 8
        $region32: #{tpu_custom_call.1} parent=27 // pred_fallthru
          _
      $region28: #{tpu_custom_call.1} parent=5 // pred_fallthru
        _
      %p201 = scmp.le.s32.totalorder 1, %s17
      %p202 = scmp.lt.s32.totalorder %s17, 3
      %p203 = pnand %p201, %p202
      %p204 = pneg %p203
      // Predicated region
      $region33: #{tpu_custom_call.1} parent=5 // pred_check
        _
      $region34: #{tpu_custom_call.1} parent=5 // pred_check_branch
        %206 = sbr.rel (%p203) target = $region36
      $region35: #{tpu_custom_call.1} parent=5 // pred_region
        %s207 = ssub.s32 %s17, 1
        %s208 = sand.u32 %s30, 1
        %s209 = scalar_lea.sflag [#allocation4], %s208
        %s210 = sand.u32 %s30, 1
        %s211 = smul.addr %s210, 16
        %s212 = scalar_lea.vmem [#allocation3], %s211
        // Predicated region
        $region37: #{tpu_custom_call.1} parent=35 // pred_check
          %p213 = pneg %p43
        $region38: #{tpu_custom_call.1} parent=35 // pred_check_branch
          %215 = sbr.rel (%p213) target = $region40
        $region39: #{tpu_custom_call.1} parent=35 // pred_region
          %216 = dma.done %s209, 256
        $region40: #{tpu_custom_call.1} parent=35 // pred_fallthru
          _
        // Predicated region
        $region41: #{tpu_custom_call.1} parent=35 // pred_check
          %p217 = pneg %p64
        $region42: #{tpu_custom_call.1} parent=35 // pred_check_branch
          %219 = sbr.rel (%p217) target = $region44
        $region43: #{tpu_custom_call.1} parent=35 // pred_region
          %220 = dma.done [#allocation7], 256
        $region44: #{tpu_custom_call.1} parent=35 // pred_fallthru
          _
        // Predicated region
        $region45: #{tpu_custom_call.1} parent=35 // pred_check
          %p221 = pneg %p85
        $region46: #{tpu_custom_call.1} parent=35 // pred_check_branch
          %223 = sbr.rel (%p221) target = $region48
        $region47: #{tpu_custom_call.1} parent=35 // pred_region
          %224 = dma.done [#allocation7], 256
        $region48: #{tpu_custom_call.1} parent=35 // pred_fallthru
          _
        %s225 = sand.u32 %s30, 1
        %s226 = scalar_lea.sflag [#allocation4], %s225
        %s227 = sand.u32 %s30, 1
        %s228 = smul.addr %s227, 16
        %s229 = scalar_lea.vmem [#allocation3], %s228
        %p230 = pneg %p43
        %p231 = pneg %p40
        %p232 = pneg %p64
        %p233 = pneg %p61
        %p234 = pneg %p85
        %p235 = pneg %p82
        %p236 = pneg %p106
        %p237 = pneg %p103
        %p238 = pneg %p132
        %p239 = pneg %p129
        %s240 = sand.u32 %s119, 1
        %s241 = scalar_lea.sflag [#allocation5], %s240
        %s242 = sand.u32 %s119, 1
        %s243 = smul.addr %s242, 16
        %s244 = scalar_lea.vmem [#allocation9], %s243
        %v246 = vld [vmem:[%s212] sm:$0xff]
        %v247 = vld [vmem:[%s212 + $0x8] sm:$0xff]
        %v248 = vpack.c.bf16 %v247, %v246
        %v249 = vld [vmem:[#allocation6] sm:$0xf]
        %v250 = vld [vmem:[#allocation6 + $0x4] sm:$0xf]
        %v251 = vld [vmem:[#allocation6 + $0x8] sm:$0xf]
        %v252 = vld [vmem:[#allocation6 + $0xc] sm:$0xf]
        %v257 = vunpack.c.l.b16 %v249
        %v258 = vunpack.c.l.b16 %v250
        %v259 = vunpack.c.l.b16 %v251
        %v260 = vunpack.c.l.b16 %v252
        %v261 = vpack.c.b16 %v258, %v257
        %v262 = vpack.c.b16 %v260, %v259
        %vm265 = vcmask 261120
        %v267 = vsel %vm265, %v248, 0
        %269 = vmatprep.subr.bf16.mxu0 0
        %270 = vmatpush1.bf16.msra.mxu0 %v261
        %271 = vmatprep.subr.bf16.mxu0 0
        %272 = vmatpush1.bf16.msra.mxu0 %v262
        %273 = vmatprep.subr.bf16.mxu0 0
        %274 = vmatpush1.bf16.msra.mxu0 0
        %275 = vmatprep.subr.bf16.mxu0 0
        %276 = vmatpush1.bf16.msra.mxu0 0
        %277 = vmatprep.subr.bf16.mxu0 0
        %278 = vmatpush1.bf16.msra.mxu0 0
        %279 = vmatprep.subr.bf16.mxu0 0
        %280 = vmatpush1.bf16.msra.mxu0 0
        %281 = vmatprep.subr.bf16.mxu0 0
        %282 = vmatpush1.bf16.msra.mxu0 0
        %283 = vmatprep.subr.bf16.mxu0 0
        %284 = vmatpush1.bf16.msra.mxu0 0
        %285 = vmatprep.subr.bf16.mxu0 0
        %286 = vmatpush1.bf16.msra.mxu0 0
        %287 = vmatprep.subr.bf16.mxu0 0
        %288 = vmatpush1.bf16.msra.mxu0 0
        %289 = vmatprep.subr.bf16.mxu0 0
        %290 = vmatpush1.bf16.msra.mxu0 0
        %291 = vmatprep.subr.bf16.mxu0 0
        %292 = vmatpush1.bf16.msra.mxu0 0
        %293 = vmatprep.subr.bf16.mxu0 0
        %294 = vmatpush1.bf16.msra.mxu0 0
        %295 = vmatprep.subr.bf16.mxu0 0
        %296 = vmatpush1.bf16.msra.mxu0 0
        %297 = vmatprep.subr.bf16.mxu0 0
        %298 = vmatpush1.bf16.msra.mxu0 0
        %299 = vmatprep.subr.bf16.mxu0 0
        %300 = vmatpush1.bf16.msra.mxu0 0
        %301 = vmatprep.mubr.bf16.mxu0 0
        %302 = vmatmul.mubr.bf16.gmra.mrb[0].mxu0 %v267
        %v303 = vpop.f32.mrb[0].mxu0
        %v304 = vadd.f32 0.0, %v303
        %v305 = vpop.f32.mrb[0].mxu0
        %v306 = vpop.f32.mrb[0].mxu0
        %v307 = vadd.f32 0.0, %v306
        %v308 = vpop.f32.mrb[0].mxu0
        %309 = vdwg.mxu0
        %v310 = vpack.c.bf16 %v307, %v304
        %312 = vrot.lane.b32.xlu0 %v310, 96
        %v313 = vpop.permute.xlu0 %312
        %vm314 = vcmask 31744
        %v316 = vsel %vm314, %v310, 0
        %v319 = vsel %vm314, %v313, 0
        %321 = vmatprep.subr.bf16.mxu0 0
        %322 = vmatpush1.bf16.xpose.msra.mxu0 %v319
        %323 = vmatprep.subr.bf16.mxu0 0
        %324 = vmatpush1.bf16.xpose.msra.mxu0 0
        %325 = vmatprep.subr.bf16.mxu0 0
        %326 = vmatpush1.bf16.xpose.msra.mxu0 0
        %327 = vmatprep.subr.bf16.mxu0 0
        %328 = vmatpush1.bf16.xpose.msra.mxu0 0
        %329 = vmatprep.subr.bf16.mxu0 0
        %330 = vmatpush1.bf16.xpose.msra.mxu0 0
        %331 = vmatprep.subr.bf16.mxu0 0
        %332 = vmatpush1.bf16.xpose.msra.mxu0 0
        %333 = vmatprep.subr.bf16.mxu0 0
        %334 = vmatpush1.bf16.xpose.msra.mxu0 0
        %335 = vmatprep.subr.bf16.mxu0 0
        %336 = vmatpush1.bf16.xpose.msra.mxu0 0
        %337 = vmatprep.subr.bf16.mxu0 0
        %338 = vmatpush1.bf16.xpose.msra.mxu0 0
        %339 = vmatprep.subr.bf16.mxu0 0
        %340 = vmatpush1.bf16.xpose.msra.mxu0 0
        %341 = vmatprep.subr.bf16.mxu0 0
        %342 = vmatpush1.bf16.xpose.msra.mxu0 0
        %343 = vmatprep.subr.bf16.mxu0 0
        %344 = vmatpush1.bf16.xpose.msra.mxu0 0
        %345 = vmatprep.subr.bf16.mxu0 0
        %346 = vmatpush1.bf16.xpose.msra.mxu0 0
        %347 = vmatprep.subr.bf16.mxu0 0
        %348 = vmatpush1.bf16.xpose.msra.mxu0 0
        %349 = vmatprep.subr.bf16.mxu0 0
        %350 = vmatpush1.bf16.xpose.msra.mxu0 0
        %351 = vmatprep.subr.bf16.mxu0 0
        %352 = vmatpush1.bf16.xpose.msra.mxu0 0
        %353 = vmatprep.mubr.bf16.mxu0 0
        %354 = vmatmul.mubr.bf16.gmra.mrb[0].mxu0 %v316
        %v355 = vpop.f32.mrb[0].mxu0
        %v356 = vadd.f32 0.0, %v355
        %v357 = vpop.f32.mrb[0].mxu0
        %v358 = vpop.f32.mrb[0].mxu0
        %v359 = vadd.f32 0.0, %v358
        %v360 = vpop.f32.mrb[0].mxu0
        %361 = vdwg.mxu0
        %v362 = vmul.f32 %v356, 0.5
        %v363 = vmul.f32 %v359, 0.5
        %vm364 = vcmask 130048
        %v365 = vsel %vm364, %v362, -inf
        %366 = vmax.xlane.f32.xlu0 %v365
        %v367 = vpop.xlane.xlu0 %366
        %v368 = vsel %vm364, %v363, -inf
        %369 = vmax.xlane.f32.xlu0 %v368
        %v370 = vpop.xlane.xlu0 %369
        %v371 = vsub.f32 %v362, %v367
        %v372 = vsub.f32 %v363, %v370
        %v373 = vmul.f32 %v371, 1.442695
        %v374 = vpow.pop %v373
        %v375 = vmul.f32 %v372, 1.442695
        %v376 = vpow.pop %v375
        %v377 = vsel %vm364, %v374, 0.0
        %378 = vadd.xlane.f32.xlu0 %v377
        %v379 = vpop.xlane.xlu0 %378
        %v380 = vsel %vm364, %v376, 0.0
        %381 = vadd.xlane.f32.xlu0 %v380
        %v382 = vpop.xlane.xlu0 %381
        %v383 = vrcp.pop %v379
        %v384 = vrcp.pop %v382
        %v385 = vmul.f32 %v374, %v383
        %v386 = vmul.f32 %v376, %v384
        %v387 = vpack.c.bf16 %v386, %v385
        %388 = vrot.lane.b32.xlu0 %v310, 64
        %v389 = vpop.permute.xlu0 %388
        %v392 = vsel %vm364, %v387, 0
        %394 = vmatprep.subr.bf16.mxu0 0
        %395 = vmatpush1.bf16.msra.mxu0 %v389
        %396 = vmatprep.subr.bf16.mxu0 0
        %397 = vmatpush1.bf16.msra.mxu0 0
        %398 = vmatprep.subr.bf16.mxu0 0
        %399 = vmatpush1.bf16.msra.mxu0 0
        %400 = vmatprep.subr.bf16.mxu0 0
        %401 = vmatpush1.bf16.msra.mxu0 0
        %402 = vmatprep.subr.bf16.mxu0 0
        %403 = vmatpush1.bf16.msra.mxu0 0
        %404 = vmatprep.subr.bf16.mxu0 0
        %405 = vmatpush1.bf16.msra.mxu0 0
        %406 = vmatprep.subr.bf16.mxu0 0
        %407 = vmatpush1.bf16.msra.mxu0 0
        %408 = vmatprep.subr.bf16.mxu0 0
        %409 = vmatpush1.bf16.msra.mxu0 0
        %410 = vmatprep.subr.bf16.mxu0 0
        %411 = vmatpush1.bf16.msra.mxu0 0
        %412 = vmatprep.subr.bf16.mxu0 0
        %413 = vmatpush1.bf16.msra.mxu0 0
        %414 = vmatprep.subr.bf16.mxu0 0
        %415 = vmatpush1.bf16.msra.mxu0 0
        %416 = vmatprep.subr.bf16.mxu0 0
        %417 = vmatpush1.bf16.msra.mxu0 0
        %418 = vmatprep.subr.bf16.mxu0 0
        %419 = vmatpush1.bf16.msra.mxu0 0
        %420 = vmatprep.subr.bf16.mxu0 0
        %421 = vmatpush1.bf16.msra.mxu0 0
        %422 = vmatprep.subr.bf16.mxu0 0
        %423 = vmatpush1.bf16.msra.mxu0 0
        %424 = vmatprep.subr.bf16.mxu0 0
        %425 = vmatpush1.bf16.msra.mxu0 0
        %426 = vmatprep.mubr.bf16.mxu0 0
        %427 = vmatmul.mubr.bf16.gmra.mrb[0].mxu0 %v392
        %v428 = vpop.f32.mrb[0].mxu0
        %v429 = vadd.f32 0.0, %v428
        %v430 = vpop.f32.mrb[0].mxu0
        %v431 = vpop.f32.mrb[0].mxu0
        %v432 = vadd.f32 0.0, %v431
        %v433 = vpop.f32.mrb[0].mxu0
        %434 = vdwg.mxu0
        %v435 = vpack.c.bf16 %v432, %v429
        %436 = vst.msk [vmem:[#allocation2] sm:$0xff] %vm314, %v435
        %437 = vrot.lane.b32.xlu0 %v310, 124
        %v438 = vpop.permute.xlu0 %437
        %439 = vrot.lane.b32.xlu0 %v310, 92
        %v440 = vpop.permute.xlu0 %439
        %v442 = vsel %vm314, %v438, 0
        %v445 = vsel %vm314, %v440, 0
        %447 = vmatprep.subr.bf16.mxu0 0
        %448 = vmatpush1.bf16.xpose.msra.mxu0 %v445
        %449 = vmatprep.subr.bf16.mxu0 0
        %450 = vmatpush1.bf16.xpose.msra.mxu0 0
        %451 = vmatprep.subr.bf16.mxu0 0
        %452 = vmatpush1.bf16.xpose.msra.mxu0 0
        %453 = vmatprep.subr.bf16.mxu0 0
        %454 = vmatpush1.bf16.xpose.msra.mxu0 0
        %455 = vmatprep.subr.bf16.mxu0 0
        %456 = vmatpush1.bf16.xpose.msra.mxu0 0
        %457 = vmatprep.subr.bf16.mxu0 0
        %458 = vmatpush1.bf16.xpose.msra.mxu0 0
        %459 = vmatprep.subr.bf16.mxu0 0
        %460 = vmatpush1.bf16.xpose.msra.mxu0 0
        %461 = vmatprep.subr.bf16.mxu0 0
        %462 = vmatpush1.bf16.xpose.msra.mxu0 0
        %463 = vmatprep.subr.bf16.mxu0 0
        %464 = vmatpush1.bf16.xpose.msra.mxu0 0
        %465 = vmatprep.subr.bf16.mxu0 0
        %466 = vmatpush1.bf16.xpose.msra.mxu0 0
        %467 = vmatprep.subr.bf16.mxu0 0
        %468 = vmatpush1.bf16.xpose.msra.mxu0 0
        %469 = vmatprep.subr.bf16.mxu0 0
        %470 = vmatpush1.bf16.xpose.msra.mxu0 0
        %471 = vmatprep.subr.bf16.mxu0 0
        %472 = vmatpush1.bf16.xpose.msra.mxu0 0
        %473 = vmatprep.subr.bf16.mxu0 0
        %474 = vmatpush1.bf16.xpose.msra.mxu0 0
        %475 = vmatprep.subr.bf16.mxu0 0
        %476 = vmatpush1.bf16.xpose.msra.mxu0 0
        %477 = vmatprep.subr.bf16.mxu0 0
        %478 = vmatpush1.bf16.xpose.msra.mxu0 0
        %479 = vmatprep.mubr.bf16.mxu0 0
        %480 = vmatmul.mubr.bf16.gmra.mrb[0].mxu0 %v442
        %v481 = vpop.f32.mrb[0].mxu0
        %v482 = vadd.f32 0.0, %v481
        %v483 = vpop.f32.mrb[0].mxu0
        %v484 = vpop.f32.mrb[0].mxu0
        %v485 = vadd.f32 0.0, %v484
        %v486 = vpop.f32.mrb[0].mxu0
        %487 = vdwg.mxu0
        %v488 = vmul.f32 %v482, 0.5
        %v489 = vmul.f32 %v485, 0.5
        %v490 = vsel %vm364, %v488, -inf
        %491 = vmax.xlane.f32.xlu0 %v490
        %v492 = vpop.xlane.xlu0 %491
        %v493 = vsel %vm364, %v489, -inf
        %494 = vmax.xlane.f32.xlu0 %v493
        %v495 = vpop.xlane.xlu0 %494
        %v496 = vsub.f32 %v488, %v492
        %v497 = vsub.f32 %v489, %v495
        %v498 = vmul.f32 %v496, 1.442695
        %v499 = vpow.pop %v498
        %v500 = vmul.f32 %v497, 1.442695
        %v501 = vpow.pop %v500
        %v502 = vsel %vm364, %v499, 0.0
        %503 = vadd.xlane.f32.xlu0 %v502
        %v504 = vpop.xlane.xlu0 %503
        %v505 = vsel %vm364, %v501, 0.0
        %506 = vadd.xlane.f32.xlu0 %v505
        %v507 = vpop.xlane.xlu0 %506
        %v508 = vrcp.pop %v504
        %v509 = vrcp.pop %v507
        %v510 = vmul.f32 %v499, %v508
        %v511 = vmul.f32 %v501, %v509
        %v512 = vpack.c.bf16 %v511, %v510
        %513 = vrot.lane.b32.xlu0 %v310, 60
        %v514 = vpop.permute.xlu0 %513
        %v517 = vsel %vm364, %v512, 0
        %519 = vmatprep.subr.bf16.mxu0 0
        %520 = vmatpush1.bf16.msra.mxu0 %v514
        %521 = vmatprep.subr.bf16.mxu0 0
        %522 = vmatpush1.bf16.msra.mxu0 0
        %523 = vmatprep.subr.bf16.mxu0 0
        %524 = vmatpush1.bf16.msra.mxu0 0
        %525 = vmatprep.subr.bf16.mxu0 0
        %526 = vmatpush1.bf16.msra.mxu0 0
        %527 = vmatprep.subr.bf16.mxu0 0
        %528 = vmatpush1.bf16.msra.mxu0 0
        %529 = vmatprep.subr.bf16.mxu0 0
        %530 = vmatpush1.bf16.msra.mxu0 0
        %531 = vmatprep.subr.bf16.mxu0 0
        %532 = vmatpush1.bf16.msra.mxu0 0
        %533 = vmatprep.subr.bf16.mxu0 0
        %534 = vmatpush1.bf16.msra.mxu0 0
        %535 = vmatprep.subr.bf16.mxu0 0
        %536 = vmatpush1.bf16.msra.mxu0 0
        %537 = vmatprep.subr.bf16.mxu0 0
        %538 = vmatpush1.bf16.msra.mxu0 0
        %539 = vmatprep.subr.bf16.mxu0 0
        %540 = vmatpush1.bf16.msra.mxu0 0
        %541 = vmatprep.subr.bf16.mxu0 0
        %542 = vmatpush1.bf16.msra.mxu0 0
        %543 = vmatprep.subr.bf16.mxu0 0
        %544 = vmatpush1.bf16.msra.mxu0 0
        %545 = vmatprep.subr.bf16.mxu0 0
        %546 = vmatpush1.bf16.msra.mxu0 0
        %547 = vmatprep.subr.bf16.mxu0 0
        %548 = vmatpush1.bf16.msra.mxu0 0
        %549 = vmatprep.subr.bf16.mxu0 0
        %550 = vmatpush1.bf16.msra.mxu0 0
        %551 = vmatprep.mubr.bf16.mxu0 0
        %552 = vmatmul.mubr.bf16.gmra.mrb[0].mxu0 %v517
        %v553 = vpop.f32.mrb[0].mxu0
        %v554 = vadd.f32 0.0, %v553
        %v555 = vpop.f32.mrb[0].mxu0
        %v556 = vpop.f32.mrb[0].mxu0
        %v557 = vadd.f32 0.0, %v556
        %v558 = vpop.f32.mrb[0].mxu0
        %559 = vdwg.mxu0
        %v560 = vpack.c.bf16 %v557, %v554
        %562 = vrot.lane.b32.xlu0 %v560, 4
        %v563 = vpop.permute.xlu0 %562
        %vm565 = vcmask 64544
        %566 = vst.msk [vmem:[#allocation2] sm:$0xff] %vm565, %v563
        %567 = vrot.lane.b32.xlu0 %v310, 120
        %v568 = vpop.permute.xlu0 %567
        %569 = vrot.lane.b32.xlu0 %v310, 88
        %v570 = vpop.permute.xlu0 %569
        %v572 = vsel %vm314, %v568, 0
        %v575 = vsel %vm314, %v570, 0
        %577 = vmatprep.subr.bf16.mxu0 0
        %578 = vmatpush1.bf16.xpose.msra.mxu0 %v575
        %579 = vmatprep.subr.bf16.mxu0 0
        %580 = vmatpush1.bf16.xpose.msra.mxu0 0
        %581 = vmatprep.subr.bf16.mxu0 0
        %582 = vmatpush1.bf16.xpose.msra.mxu0 0
        %583 = vmatprep.subr.bf16.mxu0 0
        %584 = vmatpush1.bf16.xpose.msra.mxu0 0
        %585 = vmatprep.subr.bf16.mxu0 0
        %586 = vmatpush1.bf16.xpose.msra.mxu0 0
        %587 = vmatprep.subr.bf16.mxu0 0
        %588 = vmatpush1.bf16.xpose.msra.mxu0 0
        %589 = vmatprep.subr.bf16.mxu0 0
        %590 = vmatpush1.bf16.xpose.msra.mxu0 0
        %591 = vmatprep.subr.bf16.mxu0 0
        %592 = vmatpush1.bf16.xpose.msra.mxu0 0
        %593 = vmatprep.subr.bf16.mxu0 0
        %594 = vmatpush1.bf16.xpose.msra.mxu0 0
        %595 = vmatprep.subr.bf16.mxu0 0
        %596 = vmatpush1.bf16.xpose.msra.mxu0 0
        %597 = vmatprep.subr.bf16.mxu0 0
        %598 = vmatpush1.bf16.xpose.msra.mxu0 0
        %599 = vmatprep.subr.bf16.mxu0 0
        %600 = vmatpush1.bf16.xpose.msra.mxu0 0
        %601 = vmatprep.subr.bf16.mxu0 0
        %602 = vmatpush1.bf16.xpose.msra.mxu0 0
        %603 = vmatprep.subr.bf16.mxu0 0
        %604 = vmatpush1.bf16.xpose.msra.mxu0 0
        %605 = vmatprep.subr.bf16.mxu0 0
        %606 = vmatpush1.bf16.xpose.msra.mxu0 0
        %607 = vmatprep.subr.bf16.mxu0 0
        %608 = vmatpush1.bf16.xpose.msra.mxu0 0
        %609 = vmatprep.mubr.bf16.mxu0 0
        %610 = vmatmul.mubr.bf16.gmra.mrb[0].mxu0 %v572
        %v611 = vpop.f32.mrb[0].mxu0
        %v612 = vadd.f32 0.0, %v611
        %v613 = vpop.f32.mrb[0].mxu0
        %v614 = vpop.f32.mrb[0].mxu0
        %v615 = vadd.f32 0.0, %v614
        %v616 = vpop.f32.mrb[0].mxu0
        %617 = vdwg.mxu0
        %v618 = vmul.f32 %v612, 0.5
        %v619 = vmul.f32 %v615, 0.5
        %v620 = vsel %vm364, %v618, -inf
        %621 = vmax.xlane.f32.xlu0 %v620
        %v622 = vpop.xlane.xlu0 %621
        %v623 = vsel %vm364, %v619, -inf
        %624 = vmax.xlane.f32.xlu0 %v623
        %v625 = vpop.xlane.xlu0 %624
        %v626 = vsub.f32 %v618, %v622
        %v627 = vsub.f32 %v619, %v625
        %v628 = vmul.f32 %v626, 1.442695
        %v629 = vpow.pop %v628
        %v630 = vmul.f32 %v627, 1.442695
        %v631 = vpow.pop %v630
        %v632 = vsel %vm364, %v629, 0.0
        %633 = vadd.xlane.f32.xlu0 %v632
        %v634 = vpop.xlane.xlu0 %633
        %v635 = vsel %vm364, %v631, 0.0
        %636 = vadd.xlane.f32.xlu0 %v635
        %v637 = vpop.xlane.xlu0 %636
        %v638 = vrcp.pop %v634
        %v639 = vrcp.pop %v637
        %v640 = vmul.f32 %v629, %v638
        %v641 = vmul.f32 %v631, %v639
        %v642 = vpack.c.bf16 %v641, %v640
        %643 = vrot.lane.b32.xlu0 %v310, 56
        %v644 = vpop.permute.xlu0 %643
        %v647 = vsel %vm364, %v642, 0
        %649 = vmatprep.subr.bf16.mxu0 0
        %650 = vmatpush1.bf16.msra.mxu0 %v644
        %651 = vmatprep.subr.bf16.mxu0 0
        %652 = vmatpush1.bf16.msra.mxu0 0
        %653 = vmatprep.subr.bf16.mxu0 0
        %654 = vmatpush1.bf16.msra.mxu0 0
        %655 = vmatprep.subr.bf16.mxu0 0
        %656 = vmatpush1.bf16.msra.mxu0 0
        %657 = vmatprep.subr.bf16.mxu0 0
        %658 = vmatpush1.bf16.msra.mxu0 0
        %659 = vmatprep.subr.bf16.mxu0 0
        %660 = vmatpush1.bf16.msra.mxu0 0
        %661 = vmatprep.subr.bf16.mxu0 0
        %662 = vmatpush1.bf16.msra.mxu0 0
        %663 = vmatprep.subr.bf16.mxu0 0
        %664 = vmatpush1.bf16.msra.mxu0 0
        %665 = vmatprep.subr.bf16.mxu0 0
        %666 = vmatpush1.bf16.msra.mxu0 0
        %667 = vmatprep.subr.bf16.mxu0 0
        %668 = vmatpush1.bf16.msra.mxu0 0
        %669 = vmatprep.subr.bf16.mxu0 0
        %670 = vmatpush1.bf16.msra.mxu0 0
        %671 = vmatprep.subr.bf16.mxu0 0
        %672 = vmatpush1.bf16.msra.mxu0 0
        %673 = vmatprep.subr.bf16.mxu0 0
        %674 = vmatpush1.bf16.msra.mxu0 0
        %675 = vmatprep.subr.bf16.mxu0 0
        %676 = vmatpush1.bf16.msra.mxu0 0
        %677 = vmatprep.subr.bf16.mxu0 0
        %678 = vmatpush1.bf16.msra.mxu0 0
        %679 = vmatprep.subr.bf16.mxu0 0
        %680 = vmatpush1.bf16.msra.mxu0 0
        %681 = vmatprep.mubr.bf16.mxu0 0
        %682 = vmatmul.mubr.bf16.gmra.mrb[0].mxu0 %v647
        %v683 = vpop.f32.mrb[0].mxu0
        %v684 = vadd.f32 0.0, %v683
        %v685 = vpop.f32.mrb[0].mxu0
        %v686 = vpop.f32.mrb[0].mxu0
        %v687 = vadd.f32 0.0, %v686
        %v688 = vpop.f32.mrb[0].mxu0
        %689 = vdwg.mxu0
        %v690 = vpack.c.bf16 %v687, %v684
        %692 = vrot.lane.b32.xlu0 %v690, 8
        %v693 = vpop.permute.xlu0 %692
        %vm695 = vcmask 97344
        %696 = vst.msk [vmem:[#allocation2] sm:$0xff] %vm695, %v693
        %697 = vrot.lane.b32.xlu0 %v310, 116
        %v698 = vpop.permute.xlu0 %697
        %699 = vrot.lane.b32.xlu0 %v310, 84
        %v700 = vpop.permute.xlu0 %699
        %v702 = vsel %vm314, %v698, 0
        %v705 = vsel %vm314, %v700, 0
        %707 = vmatprep.subr.bf16.mxu0 0
        %708 = vmatpush1.bf16.xpose.msra.mxu0 %v705
        %709 = vmatprep.subr.bf16.mxu0 0
        %710 = vmatpush1.bf16.xpose.msra.mxu0 0
        %711 = vmatprep.subr.bf16.mxu0 0
        %712 = vmatpush1.bf16.xpose.msra.mxu0 0
        %713 = vmatprep.subr.bf16.mxu0 0
        %714 = vmatpush1.bf16.xpose.msra.mxu0 0
        %715 = vmatprep.subr.bf16.mxu0 0
        %716 = vmatpush1.bf16.xpose.msra.mxu0 0
        %717 = vmatprep.subr.bf16.mxu0 0
        %718 = vmatpush1.bf16.xpose.msra.mxu0 0
        %719 = vmatprep.subr.bf16.mxu0 0
        %720 = vmatpush1.bf16.xpose.msra.mxu0 0
        %721 = vmatprep.subr.bf16.mxu0 0
        %722 = vmatpush1.bf16.xpose.msra.mxu0 0
        %723 = vmatprep.subr.bf16.mxu0 0
        %724 = vmatpush1.bf16.xpose.msra.mxu0 0
        %725 = vmatprep.subr.bf16.mxu0 0
        %726 = vmatpush1.bf16.xpose.msra.mxu0 0
        %727 = vmatprep.subr.bf16.mxu0 0
        %728 = vmatpush1.bf16.xpose.msra.mxu0 0
        %729 = vmatprep.subr.bf16.mxu0 0
        %730 = vmatpush1.bf16.xpose.msra.mxu0 0
        %731 = vmatprep.subr.bf16.mxu0 0
        %732 = vmatpush1.bf16.xpose.msra.mxu0 0
        %733 = vmatprep.subr.bf16.mxu0 0
        %734 = vmatpush1.bf16.xpose.msra.mxu0 0
        %735 = vmatprep.subr.bf16.mxu0 0
        %736 = vmatpush1.bf16.xpose.msra.mxu0 0
        %737 = vmatprep.subr.bf16.mxu0 0
        %738 = vmatpush1.bf16.xpose.msra.mxu0 0
        %739 = vmatprep.mubr.bf16.mxu0 0
        %740 = vmatmul.mubr.bf16.gmra.mrb[0].mxu0 %v702
        %v741 = vpop.f32.mrb[0].mxu0
        %v742 = vadd.f32 0.0, %v741
        %v743 = vpop.f32.mrb[0].mxu0
        %v744 = vpop.f32.mrb[0].mxu0
        %v745 = vadd.f32 0.0, %v744
        %v746 = vpop.f32.mrb[0].mxu0
        %747 = vdwg.mxu0
        %v748 = vmul.f32 %v742, 0.5
        %v749 = vmul.f32 %v745, 0.5
        %v750 = vsel %vm364, %v748, -inf
        %751 = vmax.xlane.f32.xlu0 %v750
        %v752 = vpop.xlane.xlu0 %751
        %v753 = vsel %vm364, %v749, -inf
        %754 = vmax.xlane.f32.xlu0 %v753
        %v755 = vpop.xlane.xlu0 %754
        %v756 = vsub.f32 %v748, %v752
        %v757 = vsub.f32 %v749, %v755
        %v758 = vmul.f32 %v756, 1.442695
        %v759 = vpow.pop %v758
        %v760 = vmul.f32 %v757, 1.442695
        %v761 = vpow.pop %v760
        %v762 = vsel %vm364, %v759, 0.0
        %763 = vadd.xlane.f32.xlu0 %v762
        %v764 = vpop.xlane.xlu0 %763
        %v765 = vsel %vm364, %v761, 0.0
        %766 = vadd.xlane.f32.xlu0 %v765
        %v767 = vpop.xlane.xlu0 %766
        %v768 = vrcp.pop %v764
        %v769 = vrcp.pop %v767
        %v770 = vmul.f32 %v759, %v768
        %v771 = vmul.f32 %v761, %v769
        %v772 = vpack.c.bf16 %v771, %v770
        %773 = vrot.lane.b32.xlu0 %v310, 52
        %v774 = vpop.permute.xlu0 %773
        %v777 = vsel %vm364, %v772, 0
        %779 = vmatprep.subr.bf16.mxu0 0
        %780 = vmatpush1.bf16.msra.mxu0 %v774
        %781 = vmatprep.subr.bf16.mxu0 0
        %782 = vmatpush1.bf16.msra.mxu0 0
        %783 = vmatprep.subr.bf16.mxu0 0
        %784 = vmatpush1.bf16.msra.mxu0 0
        %785 = vmatprep.subr.bf16.mxu0 0
        %786 = vmatpush1.bf16.msra.mxu0 0
        %787 = vmatprep.subr.bf16.mxu0 0
        %788 = vmatpush1.bf16.msra.mxu0 0
        %789 = vmatprep.subr.bf16.mxu0 0
        %790 = vmatpush1.bf16.msra.mxu0 0
        %791 = vmatprep.subr.bf16.mxu0 0
        %792 = vmatpush1.bf16.msra.mxu0 0
        %793 = vmatprep.subr.bf16.mxu0 0
        %794 = vmatpush1.bf16.msra.mxu0 0
        %795 = vmatprep.subr.bf16.mxu0 0
        %796 = vmatpush1.bf16.msra.mxu0 0
        %797 = vmatprep.subr.bf16.mxu0 0
        %798 = vmatpush1.bf16.msra.mxu0 0
        %799 = vmatprep.subr.bf16.mxu0 0
        %800 = vmatpush1.bf16.msra.mxu0 0
        %801 = vmatprep.subr.bf16.mxu0 0
        %802 = vmatpush1.bf16.msra.mxu0 0
        %803 = vmatprep.subr.bf16.mxu0 0
        %804 = vmatpush1.bf16.msra.mxu0 0
        %805 = vmatprep.subr.bf16.mxu0 0
        %806 = vmatpush1.bf16.msra.mxu0 0
        %807 = vmatprep.subr.bf16.mxu0 0
        %808 = vmatpush1.bf16.msra.mxu0 0
        %809 = vmatprep.subr.bf16.mxu0 0
        %810 = vmatpush1.bf16.msra.mxu0 0
        %811 = vmatprep.mubr.bf16.mxu0 0
        %812 = vmatmul.mubr.bf16.gmra.mrb[0].mxu0 %v777
        %v813 = vpop.f32.mrb[0].mxu0
        %v814 = vadd.f32 0.0, %v813
        %v815 = vpop.f32.mrb[0].mxu0
        %v816 = vpop.f32.mrb[0].mxu0
        %v817 = vadd.f32 0.0, %v816
        %v818 = vpop.f32.mrb[0].mxu0
        %819 = vdwg.mxu0
        %v820 = vpack.c.bf16 %v817, %v814
        %822 = vrot.lane.b32.xlu0 %v820, 12
        %v823 = vpop.permute.xlu0 %822
        %vm825 = vcmask 130144
        %826 = vst.msk [vmem:[#allocation2] sm:$0xff] %vm825, %v823
        %827 = vrot.lane.b32.xlu0 %v310, 112
        %v828 = vpop.permute.xlu0 %827
        %829 = vrot.lane.b32.xlu0 %v310, 80
        %v830 = vpop.permute.xlu0 %829
        %v832 = vsel %vm314, %v828, 0
        %v835 = vsel %vm314, %v830, 0
        %837 = vmatprep.subr.bf16.mxu0 0
        %838 = vmatpush1.bf16.xpose.msra.mxu0 %v835
        %839 = vmatprep.subr.bf16.mxu0 0
        %840 = vmatpush1.bf16.xpose.msra.mxu0 0
        %841 = vmatprep.subr.bf16.mxu0 0
        %842 = vmatpush1.bf16.xpose.msra.mxu0 0
        %843 = vmatprep.subr.bf16.mxu0 0
        %844 = vmatpush1.bf16.xpose.msra.mxu0 0
        %845 = vmatprep.subr.bf16.mxu0 0
        %846 = vmatpush1.bf16.xpose.msra.mxu0 0
        %847 = vmatprep.subr.bf16.mxu0 0
        %848 = vmatpush1.bf16.xpose.msra.mxu0 0
        %849 = vmatprep.subr.bf16.mxu0 0
        %850 = vmatpush1.bf16.xpose.msra.mxu0 0
        %851 = vmatprep.subr.bf16.mxu0 0
        %852 = vmatpush1.bf16.xpose.msra.mxu0 0
        %853 = vmatprep.subr.bf16.mxu0 0
        %854 = vmatpush1.bf16.xpose.msra.mxu0 0
        %855 = vmatprep.subr.bf16.mxu0 0
        %856 = vmatpush1.bf16.xpose.msra.mxu0 0
        %857 = vmatprep.subr.bf16.mxu0 0
        %858 = vmatpush1.bf16.xpose.msra.mxu0 0
        %859 = vmatprep.subr.bf16.mxu0 0
        %860 = vmatpush1.bf16.xpose.msra.mxu0 0
        %861 = vmatprep.subr.bf16.mxu0 0
        %862 = vmatpush1.bf16.xpose.msra.mxu0 0
        %863 = vmatprep.subr.bf16.mxu0 0
        %864 = vmatpush1.bf16.xpose.msra.mxu0 0
        %865 = vmatprep.subr.bf16.mxu0 0
        %866 = vmatpush1.bf16.xpose.msra.mxu0 0
        %867 = vmatprep.subr.bf16.mxu0 0
        %868 = vmatpush1.bf16.xpose.msra.mxu0 0
        %869 = vmatprep.mubr.bf16.mxu0 0
        %870 = vmatmul.mubr.bf16.gmra.mrb[0].mxu0 %v832
        %v871 = vpop.f32.mrb[0].mxu0
        %v872 = vadd.f32 0.0, %v871
        %v873 = vpop.f32.mrb[0].mxu0
        %v874 = vpop.f32.mrb[0].mxu0
        %v875 = vadd.f32 0.0, %v874
        %v876 = vpop.f32.mrb[0].mxu0
        %877 = vdwg.mxu0
        %v878 = vmul.f32 %v872, 0.5
        %v879 = vmul.f32 %v875, 0.5
        %v880 = vsel %vm364, %v878, -inf
        %881 = vmax.xlane.f32.xlu0 %v880
        %v882 = vpop.xlane.xlu0 %881
        %v883 = vsel %vm364, %v879, -inf
        %884 = vmax.xlane.f32.xlu0 %v883
        %v885 = vpop.xlane.xlu0 %884
        %v886 = vsub.f32 %v878, %v882
        %v887 = vsub.f32 %v879, %v885
        %v888 = vmul.f32 %v886, 1.442695
        %v889 = vpow.pop %v888
        %v890 = vmul.f32 %v887, 1.442695
        %v891 = vpow.pop %v890
        %v892 = vsel %vm364, %v889, 0.0
        %893 = vadd.xlane.f32.xlu0 %v892
        %v894 = vpop.xlane.xlu0 %893
        %v895 = vsel %vm364, %v891, 0.0
        %896 = vadd.xlane.f32.xlu0 %v895
        %v897 = vpop.xlane.xlu0 %896
        %v898 = vrcp.pop %v894
        %v899 = vrcp.pop %v897
        %v900 = vmul.f32 %v889, %v898
        %v901 = vmul.f32 %v891, %v899
        %v902 = vpack.c.bf16 %v901, %v900
        %903 = vrot.lane.b32.xlu0 %v310, 48
        %v904 = vpop.permute.xlu0 %903
        %v907 = vsel %vm364, %v902, 0
        %909 = vmatprep.subr.bf16.mxu0 0
        %910 = vmatpush1.bf16.msra.mxu0 %v904
        %911 = vmatprep.subr.bf16.mxu0 0
        %912 = vmatpush1.bf16.msra.mxu0 0
        %913 = vmatprep.subr.bf16.mxu0 0
        %914 = vmatpush1.bf16.msra.mxu0 0
        %915 = vmatprep.subr.bf16.mxu0 0
        %916 = vmatpush1.bf16.msra.mxu0 0
        %917 = vmatprep.subr.bf16.mxu0 0
        %918 = vmatpush1.bf16.msra.mxu0 0
        %919 = vmatprep.subr.bf16.mxu0 0
        %920 = vmatpush1.bf16.msra.mxu0 0
        %921 = vmatprep.subr.bf16.mxu0 0
        %922 = vmatpush1.bf16.msra.mxu0 0
        %923 = vmatprep.subr.bf16.mxu0 0
        %924 = vmatpush1.bf16.msra.mxu0 0
        %925 = vmatprep.subr.bf16.mxu0 0
        %926 = vmatpush1.bf16.msra.mxu0 0
        %927 = vmatprep.subr.bf16.mxu0 0
        %928 = vmatpush1.bf16.msra.mxu0 0
        %929 = vmatprep.subr.bf16.mxu0 0
        %930 = vmatpush1.bf16.msra.mxu0 0
        %931 = vmatprep.subr.bf16.mxu0 0
        %932 = vmatpush1.bf16.msra.mxu0 0
        %933 = vmatprep.subr.bf16.mxu0 0
        %934 = vmatpush1.bf16.msra.mxu0 0
        %935 = vmatprep.subr.bf16.mxu0 0
        %936 = vmatpush1.bf16.msra.mxu0 0
        %937 = vmatprep.subr.bf16.mxu0 0
        %938 = vmatpush1.bf16.msra.mxu0 0
        %939 = vmatprep.subr.bf16.mxu0 0
        %940 = vmatpush1.bf16.msra.mxu0 0
        %941 = vmatprep.mubr.bf16.mxu0 0
        %942 = vmatmul.mubr.bf16.gmra.mrb[0].mxu0 %v907
        %v943 = vpop.f32.mrb[0].mxu0
        %v944 = vadd.f32 0.0, %v943
        %v945 = vpop.f32.mrb[0].mxu0
        %v946 = vpop.f32.mrb[0].mxu0
        %v947 = vadd.f32 0.0, %v946
        %v948 = vpop.f32.mrb[0].mxu0
        %949 = vdwg.mxu0
        %v950 = vpack.c.bf16 %v947, %v944
        %952 = vrot.lane.b32.xlu0 %v950, 16
        %v953 = vpop.permute.xlu0 %952
        %vm955 = vcmask 162944
        %956 = vst.msk [vmem:[#allocation2] sm:$0xff] %vm955, %v953
        %957 = vrot.lane.b32.xlu0 %v310, 108
        %v958 = vpop.permute.xlu0 %957
        %959 = vrot.lane.b32.xlu0 %v310, 76
        %v960 = vpop.permute.xlu0 %959
        %v962 = vsel %vm314, %v958, 0
        %v965 = vsel %vm314, %v960, 0
        %967 = vmatprep.subr.bf16.mxu0 0
        %968 = vmatpush1.bf16.xpose.msra.mxu0 %v965
        %969 = vmatprep.subr.bf16.mxu0 0
        %970 = vmatpush1.bf16.xpose.msra.mxu0 0
        %971 = vmatprep.subr.bf16.mxu0 0
        %972 = vmatpush1.bf16.xpose.msra.mxu0 0
        %973 = vmatprep.subr.bf16.mxu0 0
        %974 = vmatpush1.bf16.xpose.msra.mxu0 0
        %975 = vmatprep.subr.bf16.mxu0 0
        %976 = vmatpush1.bf16.xpose.msra.mxu0 0
        %977 = vmatprep.subr.bf16.mxu0 0
        %978 = vmatpush1.bf16.xpose.msra.mxu0 0
        %979 = vmatprep.subr.bf16.mxu0 0
        %980 = vmatpush1.bf16.xpose.msra.mxu0 0
        %981 = vmatprep.subr.bf16.mxu0 0
        %982 = vmatpush1.bf16.xpose.msra.mxu0 0
        %983 = vmatprep.subr.bf16.mxu0 0
        %984 = vmatpush1.bf16.xpose.msra.mxu0 0
        %985 = vmatprep.subr.bf16.mxu0 0
        %986 = vmatpush1.bf16.xpose.msra.mxu0 0
        %987 = vmatprep.subr.bf16.mxu0 0
        %988 = vmatpush1.bf16.xpose.msra.mxu0 0
        %989 = vmatprep.subr.bf16.mxu0 0
        %990 = vmatpush1.bf16.xpose.msra.mxu0 0
        %991 = vmatprep.subr.bf16.mxu0 0
        %992 = vmatpush1.bf16.xpose.msra.mxu0 0
        %993 = vmatprep.subr.bf16.mxu0 0
        %994 = vmatpush1.bf16.xpose.msra.mxu0 0
        %995 = vmatprep.subr.bf16.mxu0 0
        %996 = vmatpush1.bf16.xpose.msra.mxu0 0
        %997 = vmatprep.subr.bf16.mxu0 0
        %998 = vmatpush1.bf16.xpose.msra.mxu0 0
        %999 = vmatprep.mubr.bf16.mxu0 0
        %1000 = vmatmul.mubr.bf16.gmra.mrb[0].mxu0 %v962
        %v1001 = vpop.f32.mrb[0].mxu0
        %v1002 = vadd.f32 0.0, %v1001
        %v1003 = vpop.f32.mrb[0].mxu0
        %v1004 = vpop.f32.mrb[0].mxu0
        %v1005 = vadd.f32 0.0, %v1004
        %v1006 = vpop.f32.mrb[0].mxu0
        %1007 = vdwg.mxu0
        %v1008 = vmul.f32 %v1002, 0.5
        %v1009 = vmul.f32 %v1005, 0.5
        %v1010 = vsel %vm364, %v1008, -inf
        %1011 = vmax.xlane.f32.xlu0 %v1010
        %v1012 = vpop.xlane.xlu0 %1011
        %v1013 = vsel %vm364, %v1009, -inf
        %1014 = vmax.xlane.f32.xlu0 %v1013
        %v1015 = vpop.xlane.xlu0 %1014
        %v1016 = vsub.f32 %v1008, %v1012
        %v1017 = vsub.f32 %v1009, %v1015
        %v1018 = vmul.f32 %v1016, 1.442695
        %v1019 = vpow.pop %v1018
        %v1020 = vmul.f32 %v1017, 1.442695
        %v1021 = vpow.pop %v1020
        %v1022 = vsel %vm364, %v1019, 0.0
        %1023 = vadd.xlane.f32.xlu0 %v1022
        %v1024 = vpop.xlane.xlu0 %1023
        %v1025 = vsel %vm364, %v1021, 0.0
        %1026 = vadd.xlane.f32.xlu0 %v1025
        %v1027 = vpop.xlane.xlu0 %1026
        %v1028 = vrcp.pop %v1024
        %v1029 = vrcp.pop %v1027
        %v1030 = vmul.f32 %v1019, %v1028
        %v1031 = vmul.f32 %v1021, %v1029
        %v1032 = vpack.c.bf16 %v1031, %v1030
        %1033 = vrot.lane.b32.xlu0 %v310, 44
        %v1034 = vpop.permute.xlu0 %1033
        %v1037 = vsel %vm364, %v1032, 0
        %1039 = vmatprep.subr.bf16.mxu0 0
        %1040 = vmatpush1.bf16.msra.mxu0 %v1034
        %1041 = vmatprep.subr.bf16.mxu0 0
        %1042 = vmatpush1.bf16.msra.mxu0 0
        %1043 = vmatprep.subr.bf16.mxu0 0
        %1044 = vmatpush1.bf16.msra.mxu0 0
        %1045 = vmatprep.subr.bf16.mxu0 0
        %1046 = vmatpush1.bf16.msra.mxu0 0
        %1047 = vmatprep.subr.bf16.mxu0 0
        %1048 = vmatpush1.bf16.msra.mxu0 0
        %1049 = vmatprep.subr.bf16.mxu0 0
        %1050 = vmatpush1.bf16.msra.mxu0 0
        %1051 = vmatprep.subr.bf16.mxu0 0
        %1052 = vmatpush1.bf16.msra.mxu0 0
        %1053 = vmatprep.subr.bf16.mxu0 0
        %1054 = vmatpush1.bf16.msra.mxu0 0
        %1055 = vmatprep.subr.bf16.mxu0 0
        %1056 = vmatpush1.bf16.msra.mxu0 0
        %1057 = vmatprep.subr.bf16.mxu0 0
        %1058 = vmatpush1.bf16.msra.mxu0 0
        %1059 = vmatprep.subr.bf16.mxu0 0
        %1060 = vmatpush1.bf16.msra.mxu0 0
        %1061 = vmatprep.subr.bf16.mxu0 0
        %1062 = vmatpush1.bf16.msra.mxu0 0
        %1063 = vmatprep.subr.bf16.mxu0 0
        %1064 = vmatpush1.bf16.msra.mxu0 0
        %1065 = vmatprep.subr.bf16.mxu0 0
        %1066 = vmatpush1.bf16.msra.mxu0 0
        %1067 = vmatprep.subr.bf16.mxu0 0
        %1068 = vmatpush1.bf16.msra.mxu0 0
        %1069 = vmatprep.subr.bf16.mxu0 0
        %1070 = vmatpush1.bf16.msra.mxu0 0
        %1071 = vmatprep.mubr.bf16.mxu0 0
        %1072 = vmatmul.mubr.bf16.gmra.mrb[0].mxu0 %v1037
        %v1073 = vpop.f32.mrb[0].mxu0
        %v1074 = vadd.f32 0.0, %v1073
        %v1075 = vpop.f32.mrb[0].mxu0
        %v1076 = vpop.f32.mrb[0].mxu0
        %v1077 = vadd.f32 0.0, %v1076
        %v1078 = vpop.f32.mrb[0].mxu0
        %1079 = vdwg.mxu0
        %v1080 = vpack.c.bf16 %v1077, %v1074
        %1082 = vrot.lane.b32.xlu0 %v1080, 20
        %v1083 = vpop.permute.xlu0 %1082
        %vm1085 = vcmask 195744
        %1086 = vst.msk [vmem:[#allocation2] sm:$0xff] %vm1085, %v1083
        %1087 = vrot.lane.b32.xlu0 %v310, 104
        %v1088 = vpop.permute.xlu0 %1087
        %1089 = vrot.lane.b32.xlu0 %v310, 72
        %v1090 = vpop.permute.xlu0 %1089
        %v1092 = vsel %vm314, %v1088, 0
        %v1095 = vsel %vm314, %v1090, 0
        %1097 = vmatprep.subr.bf16.mxu0 0
        %1098 = vmatpush1.bf16.xpose.msra.mxu0 %v1095
        %1099 = vmatprep.subr.bf16.mxu0 0
        %1100 = vmatpush1.bf16.xpose.msra.mxu0 0
        %1101 = vmatprep.subr.bf16.mxu0 0
        %1102 = vmatpush1.bf16.xpose.msra.mxu0 0
        %1103 = vmatprep.subr.bf16.mxu0 0
        %1104 = vmatpush1.bf16.xpose.msra.mxu0 0
        %1105 = vmatprep.subr.bf16.mxu0 0
        %1106 = vmatpush1.bf16.xpose.msra.mxu0 0
        %1107 = vmatprep.subr.bf16.mxu0 0
        %1108 = vmatpush1.bf16.xpose.msra.mxu0 0
        %1109 = vmatprep.subr.bf16.mxu0 0
        %1110 = vmatpush1.bf16.xpose.msra.mxu0 0
        %1111 = vmatprep.subr.bf16.mxu0 0
        %1112 = vmatpush1.bf16.xpose.msra.mxu0 0
        %1113 = vmatprep.subr.bf16.mxu0 0
        %1114 = vmatpush1.bf16.xpose.msra.mxu0 0
        %1115 = vmatprep.subr.bf16.mxu0 0
        %1116 = vmatpush1.bf16.xpose.msra.mxu0 0
        %1117 = vmatprep.subr.bf16.mxu0 0
        %1118 = vmatpush1.bf16.xpose.msra.mxu0 0
        %1119 = vmatprep.subr.bf16.mxu0 0
        %1120 = vmatpush1.bf16.xpose.msra.mxu0 0
        %1121 = vmatprep.subr.bf16.mxu0 0
        %1122 = vmatpush1.bf16.xpose.msra.mxu0 0
        %1123 = vmatprep.subr.bf16.mxu0 0
        %1124 = vmatpush1.bf16.xpose.msra.mxu0 0
        %1125 = vmatprep.subr.bf16.mxu0 0
        %1126 = vmatpush1.bf16.xpose.msra.mxu0 0
        %1127 = vmatprep.subr.bf16.mxu0 0
        %1128 = vmatpush1.bf16.xpose.msra.mxu0 0
        %1129 = vmatprep.mubr.bf16.mxu0 0
        %1130 = vmatmul.mubr.bf16.gmra.mrb[0].mxu0 %v1092
        %v1131 = vpop.f32.mrb[0].mxu0
        %v1132 = vadd.f32 0.0, %v1131
        %v1133 = vpop.f32.mrb[0].mxu0
        %v1134 = vpop.f32.mrb[0].mxu0
        %v1135 = vadd.f32 0.0, %v1134
        %v1136 = vpop.f32.mrb[0].mxu0
        %1137 = vdwg.mxu0
        %v1138 = vmul.f32 %v1132, 0.5
        %v1139 = vmul.f32 %v1135, 0.5
        %v1140 = vsel %vm364, %v1138, -inf
        %1141 = vmax.xlane.f32.xlu0 %v1140
        %v1142 = vpop.xlane.xlu0 %1141
        %v1143 = vsel %vm364, %v1139, -inf
        %1144 = vmax.xlane.f32.xlu0 %v1143
        %v1145 = vpop.xlane.xlu0 %1144
        %v1146 = vsub.f32 %v1138, %v1142
        %v1147 = vsub.f32 %v1139, %v1145
        %v1148 = vmul.f32 %v1146, 1.442695
        %v1149 = vpow.pop %v1148
        %v1150 = vmul.f32 %v1147, 1.442695
        %v1151 = vpow.pop %v1150
        %v1152 = vsel %vm364, %v1149, 0.0
        %1153 = vadd.xlane.f32.xlu0 %v1152
        %v1154 = vpop.xlane.xlu0 %1153
        %v1155 = vsel %vm364, %v1151, 0.0
        %1156 = vadd.xlane.f32.xlu0 %v1155
        %v1157 = vpop.xlane.xlu0 %1156
        %v1158 = vrcp.pop %v1154
        %v1159 = vrcp.pop %v1157
        %v1160 = vmul.f32 %v1149, %v1158
        %v1161 = vmul.f32 %v1151, %v1159
        %v1162 = vpack.c.bf16 %v1161, %v1160
        %1163 = vrot.lane.b32.xlu0 %v310, 40
        %v1164 = vpop.permute.xlu0 %1163
        %v1167 = vsel %vm364, %v1162, 0
        %1169 = vmatprep.subr.bf16.mxu0 0
        %1170 = vmatpush1.bf16.msra.mxu0 %v1164
        %1171 = vmatprep.subr.bf16.mxu0 0
        %1172 = vmatpush1.bf16.msra.mxu0 0
        %1173 = vmatprep.subr.bf16.mxu0 0
        %1174 = vmatpush1.bf16.msra.mxu0 0
        %1175 = vmatprep.subr.bf16.mxu0 0
        %1176 = vmatpush1.bf16.msra.mxu0 0
        %1177 = vmatprep.subr.bf16.mxu0 0
        %1178 = vmatpush1.bf16.msra.mxu0 0
        %1179 = vmatprep.subr.bf16.mxu0 0
        %1180 = vmatpush1.bf16.msra.mxu0 0
        %1181 = vmatprep.subr.bf16.mxu0 0
        %1182 = vmatpush1.bf16.msra.mxu0 0
        %1183 = vmatprep.subr.bf16.mxu0 0
        %1184 = vmatpush1.bf16.msra.mxu0 0
        %1185 = vmatprep.subr.bf16.mxu0 0
        %1186 = vmatpush1.bf16.msra.mxu0 0
        %1187 = vmatprep.subr.bf16.mxu0 0
        %1188 = vmatpush1.bf16.msra.mxu0 0
        %1189 = vmatprep.subr.bf16.mxu0 0
        %1190 = vmatpush1.bf16.msra.mxu0 0
        %1191 = vmatprep.subr.bf16.mxu0 0
        %1192 = vmatpush1.bf16.msra.mxu0 0
        %1193 = vmatprep.subr.bf16.mxu0 0
        %1194 = vmatpush1.bf16.msra.mxu0 0
        %1195 = vmatprep.subr.bf16.mxu0 0
        %1196 = vmatpush1.bf16.msra.mxu0 0
        %1197 = vmatprep.subr.bf16.mxu0 0
        %1198 = vmatpush1.bf16.msra.mxu0 0
        %1199 = vmatprep.subr.bf16.mxu0 0
        %1200 = vmatpush1.bf16.msra.mxu0 0
        %1201 = vmatprep.mubr.bf16.mxu0 0
        %1202 = vmatmul.mubr.bf16.gmra.mrb[0].mxu0 %v1167
        %v1203 = vpop.f32.mrb[0].mxu0
        %v1204 = vadd.f32 0.0, %v1203
        %v1205 = vpop.f32.mrb[0].mxu0
        %v1206 = vpop.f32.mrb[0].mxu0
        %v1207 = vadd.f32 0.0, %v1206
        %v1208 = vpop.f32.mrb[0].mxu0
        %1209 = vdwg.mxu0
        %v1210 = vpack.c.bf16 %v1207, %v1204
        %1212 = vrot.lane.b32.xlu0 %v1210, 24
        %v1213 = vpop.permute.xlu0 %1212
        %vm1215 = vcmask 228544
        %1216 = vst.msk [vmem:[#allocation2] sm:$0xff] %vm1215, %v1213
        %1217 = vrot.lane.b32.xlu0 %v310, 100
        %v1218 = vpop.permute.xlu0 %1217
        %1219 = vrot.lane.b32.xlu0 %v310, 68
        %v1220 = vpop.permute.xlu0 %1219
        %v1222 = vsel %vm314, %v1218, 0
        %v1225 = vsel %vm314, %v1220, 0
        %1227 = vmatprep.subr.bf16.mxu0 0
        %1228 = vmatpush1.bf16.xpose.msra.mxu0 %v1225
        %1229 = vmatprep.subr.bf16.mxu0 0
        %1230 = vmatpush1.bf16.xpose.msra.mxu0 0
        %1231 = vmatprep.subr.bf16.mxu0 0
        %1232 = vmatpush1.bf16.xpose.msra.mxu0 0
        %1233 = vmatprep.subr.bf16.mxu0 0
        %1234 = vmatpush1.bf16.xpose.msra.mxu0 0
        %1235 = vmatprep.subr.bf16.mxu0 0
        %1236 = vmatpush1.bf16.xpose.msra.mxu0 0
        %1237 = vmatprep.subr.bf16.mxu0 0
        %1238 = vmatpush1.bf16.xpose.msra.mxu0 0
        %1239 = vmatprep.subr.bf16.mxu0 0
        %1240 = vmatpush1.bf16.xpose.msra.mxu0 0
        %1241 = vmatprep.subr.bf16.mxu0 0
        %1242 = vmatpush1.bf16.xpose.msra.mxu0 0
        %1243 = vmatprep.subr.bf16.mxu0 0
        %1244 = vmatpush1.bf16.xpose.msra.mxu0 0
        %1245 = vmatprep.subr.bf16.mxu0 0
        %1246 = vmatpush1.bf16.xpose.msra.mxu0 0
        %1247 = vmatprep.subr.bf16.mxu0 0
        %1248 = vmatpush1.bf16.xpose.msra.mxu0 0
        %1249 = vmatprep.subr.bf16.mxu0 0
        %1250 = vmatpush1.bf16.xpose.msra.mxu0 0
        %1251 = vmatprep.subr.bf16.mxu0 0
        %1252 = vmatpush1.bf16.xpose.msra.mxu0 0
        %1253 = vmatprep.subr.bf16.mxu0 0
        %1254 = vmatpush1.bf16.xpose.msra.mxu0 0
        %1255 = vmatprep.subr.bf16.mxu0 0
        %1256 = vmatpush1.bf16.xpose.msra.mxu0 0
        %1257 = vmatprep.subr.bf16.mxu0 0
        %1258 = vmatpush1.bf16.xpose.msra.mxu0 0
        %1259 = vmatprep.mubr.bf16.mxu0 0
        %1260 = vmatmul.mubr.bf16.gmra.mrb[0].mxu0 %v1222
        %v1261 = vpop.f32.mrb[0].mxu0
        %v1262 = vadd.f32 0.0, %v1261
        %v1263 = vpop.f32.mrb[0].mxu0
        %v1264 = vpop.f32.mrb[0].mxu0
        %v1265 = vadd.f32 0.0, %v1264
        %v1266 = vpop.f32.mrb[0].mxu0
        %1267 = vdwg.mxu0
        %v1268 = vmul.f32 %v1262, 0.5
        %v1269 = vmul.f32 %v1265, 0.5
        %v1270 = vsel %vm364, %v1268, -inf
        %1271 = vmax.xlane.f32.xlu0 %v1270
        %v1272 = vpop.xlane.xlu0 %1271
        %v1273 = vsel %vm364, %v1269, -inf
        %1274 = vmax.xlane.f32.xlu0 %v1273
        %v1275 = vpop.xlane.xlu0 %1274
        %v1276 = vsub.f32 %v1268, %v1272
        %v1277 = vsub.f32 %v1269, %v1275
        %v1278 = vmul.f32 %v1276, 1.442695
        %v1279 = vpow.pop %v1278
        %v1280 = vmul.f32 %v1277, 1.442695
        %v1281 = vpow.pop %v1280
        %v1282 = vsel %vm364, %v1279, 0.0
        %1283 = vadd.xlane.f32.xlu0 %v1282
        %v1284 = vpop.xlane.xlu0 %1283
        %v1285 = vsel %vm364, %v1281, 0.0
        %1286 = vadd.xlane.f32.xlu0 %v1285
        %v1287 = vpop.xlane.xlu0 %1286
        %v1288 = vrcp.pop %v1284
        %v1289 = vrcp.pop %v1287
        %v1290 = vmul.f32 %v1279, %v1288
        %v1291 = vmul.f32 %v1281, %v1289
        %v1292 = vpack.c.bf16 %v1291, %v1290
        %1293 = vrot.lane.b32.xlu0 %v310, 36
        %v1294 = vpop.permute.xlu0 %1293
        %v1297 = vsel %vm364, %v1292, 0
        %1299 = vmatprep.subr.bf16.mxu0 0
        %1300 = vmatpush1.bf16.msra.mxu0 %v1294
        %1301 = vmatprep.subr.bf16.mxu0 0
        %1302 = vmatpush1.bf16.msra.mxu0 0
        %1303 = vmatprep.subr.bf16.mxu0 0
        %1304 = vmatpush1.bf16.msra.mxu0 0
        %1305 = vmatprep.subr.bf16.mxu0 0
        %1306 = vmatpush1.bf16.msra.mxu0 0
        %1307 = vmatprep.subr.bf16.mxu0 0
        %1308 = vmatpush1.bf16.msra.mxu0 0
        %1309 = vmatprep.subr.bf16.mxu0 0
        %1310 = vmatpush1.bf16.msra.mxu0 0
        %1311 = vmatprep.subr.bf16.mxu0 0
        %1312 = vmatpush1.bf16.msra.mxu0 0
        %1313 = vmatprep.subr.bf16.mxu0 0
        %1314 = vmatpush1.bf16.msra.mxu0 0
        %1315 = vmatprep.subr.bf16.mxu0 0
        %1316 = vmatpush1.bf16.msra.mxu0 0
        %1317 = vmatprep.subr.bf16.mxu0 0
        %1318 = vmatpush1.bf16.msra.mxu0 0
        %1319 = vmatprep.subr.bf16.mxu0 0
        %1320 = vmatpush1.bf16.msra.mxu0 0
        %1321 = vmatprep.subr.bf16.mxu0 0
        %1322 = vmatpush1.bf16.msra.mxu0 0
        %1323 = vmatprep.subr.bf16.mxu0 0
        %1324 = vmatpush1.bf16.msra.mxu0 0
        %1325 = vmatprep.subr.bf16.mxu0 0
        %1326 = vmatpush1.bf16.msra.mxu0 0
        %1327 = vmatprep.subr.bf16.mxu0 0
        %1328 = vmatpush1.bf16.msra.mxu0 0
        %1329 = vmatprep.subr.bf16.mxu0 0
        %1330 = vmatpush1.bf16.msra.mxu0 0
        %1331 = vmatprep.mubr.bf16.mxu0 0
        %1332 = vmatmul.mubr.bf16.gmra.mrb[0].mxu0 %v1297
        %v1333 = vpop.f32.mrb[0].mxu0
        %v1334 = vadd.f32 0.0, %v1333
        %v1335 = vpop.f32.mrb[0].mxu0
        %v1336 = vpop.f32.mrb[0].mxu0
        %v1337 = vadd.f32 0.0, %v1336
        %v1338 = vpop.f32.mrb[0].mxu0
        %1339 = vdwg.mxu0
        %v1340 = vpack.c.bf16 %v1337, %v1334
        %1342 = vrot.lane.b32.xlu0 %v1340, 28
        %v1343 = vpop.permute.xlu0 %1342
        %vm1345 = vcmask 261344
        %1346 = vst.msk [vmem:[#allocation2] sm:$0xff] %vm1345, %v1343
        %v1347 = vld [vmem:[#allocation2] sm:$0xff]
        %v1348 = vld [vmem:[#allocation8] sm:$0xf]
        %v1349 = vld [vmem:[#allocation8 + $0x4] sm:$0xf]
        %v1350 = vld [vmem:[#allocation8 + $0x8] sm:$0xf]
        %v1351 = vld [vmem:[#allocation8 + $0xc] sm:$0xf]
        %v1352 = vld [vmem:[%s3] sm:$0x1]
        %v1354 = vlaneseq
        %v1355 = vshrl.u32 %v1354, 7
        %v1356 = vsub.s32 0, %v1355
        %v1357 = vrot.slane %v1352, %v1356
        %v1363 = vunpack.c.l.b16 %v1348
        %v1364 = vunpack.c.l.b16 %v1349
        %v1365 = vunpack.c.l.b16 %v1350
        %v1366 = vunpack.c.l.b16 %v1351
        %v1367 = vpack.c.b16 %v1364, %v1363
        %v1368 = vpack.c.b16 %v1366, %v1365
        %v1372 = vsel %vm265, %v1347, 0
        %1374 = vmatprep.subr.bf16.mxu0 0
        %1375 = vmatpush1.bf16.msra.mxu0 %v1367
        %1376 = vmatprep.subr.bf16.mxu0 0
        %1377 = vmatpush1.bf16.msra.mxu0 %v1368
        %1378 = vmatprep.subr.bf16.mxu0 0
        %1379 = vmatpush1.bf16.msra.mxu0 0
        %1380 = vmatprep.subr.bf16.mxu0 0
        %1381 = vmatpush1.bf16.msra.mxu0 0
        %1382 = vmatprep.subr.bf16.mxu0 0
        %1383 = vmatpush1.bf16.msra.mxu0 0
        %1384 = vmatprep.subr.bf16.mxu0 0
        %1385 = vmatpush1.bf16.msra.mxu0 0
        %1386 = vmatprep.subr.bf16.mxu0 0
        %1387 = vmatpush1.bf16.msra.mxu0 0
        %1388 = vmatprep.subr.bf16.mxu0 0
        %1389 = vmatpush1.bf16.msra.mxu0 0
        %1390 = vmatprep.subr.bf16.mxu0 0
        %1391 = vmatpush1.bf16.msra.mxu0 0
        %1392 = vmatprep.subr.bf16.mxu0 0
        %1393 = vmatpush1.bf16.msra.mxu0 0
        %1394 = vmatprep.subr.bf16.mxu0 0
        %1395 = vmatpush1.bf16.msra.mxu0 0
        %1396 = vmatprep.subr.bf16.mxu0 0
        %1397 = vmatpush1.bf16.msra.mxu0 0
        %1398 = vmatprep.subr.bf16.mxu0 0
        %1399 = vmatpush1.bf16.msra.mxu0 0
        %1400 = vmatprep.subr.bf16.mxu0 0
        %1401 = vmatpush1.bf16.msra.mxu0 0
        %1402 = vmatprep.subr.bf16.mxu0 0
        %1403 = vmatpush1.bf16.msra.mxu0 0
        %1404 = vmatprep.subr.bf16.mxu0 0
        %1405 = vmatpush1.bf16.msra.mxu0 0
        %1406 = vmatprep.mubr.bf16.mxu0 0
        %1407 = vmatmul.mubr.bf16.gmra.mrb[0].mxu0 %v1372
        %v1408 = vpop.f32.mrb[0].mxu0
        %v1409 = vadd.f32 %v1357, %v1408
        %v1410 = vpop.f32.mrb[0].mxu0
        %v1411 = vpop.f32.mrb[0].mxu0
        %v1412 = vadd.f32 %v1357, %v1411
        %v1413 = vpop.f32.mrb[0].mxu0
        %1414 = vdwg.mxu0
        %1415 = vst.msk [vmem:[%s244] sm:$0xff] %vm265, %v1409
        %1416 = vst.msk [vmem:[%s244 + $0x8] sm:$0xff] %vm265, %v1412
        %s1417 = sand.u32 %s119, 1
        %s1418 = scalar_lea.sflag [#allocation5], %s1417
        %s1419 = sand.u32 %s119, 1
        %s1420 = smul.addr %s1419, 16
        %s1421 = scalar_lea.vmem [#allocation9], %s1420
        // Predicated region
        $region49: #{tpu_custom_call.1} parent=35 // pred_check
          %p1422 = pneg %p129
        $region50: #{tpu_custom_call.1} parent=35 // pred_check_branch
          %1424 = sbr.rel (%p1422) target = $region52
        $region51: #{tpu_custom_call.1} parent=35 // pred_region
          %s1426 = ssub.s32 256, 256
          %1427 = vsyncadd %s1418, %s1426
          %s1428 = smul.addr %s22, 2
          %s1429 = smul.addr %s1428, 128
          %s1430 = scalar_lea.hbm %s4, %s1429
          %s1431 = sshll.u32 %s1421, 4
          %s1432 = int_to_ptr.vmem [resolvable:$true] %s1431
          %1437 = dma.vmem_to_hbm [thread:$0]  %s1432, 256, %s1430, %s1418, 128, 128, 8
        $region52: #{tpu_custom_call.1} parent=35 // pred_fallthru
          _
      $region36: #{tpu_custom_call.1} parent=5 // pred_fallthru
        _
      %p1438 = scmp.le.s32.totalorder 2, %s17
      // Predicated region
      $region53: #{tpu_custom_call.1} parent=5 // pred_check
        %p1439 = pneg %p1438
      $region54: #{tpu_custom_call.1} parent=5 // pred_check_branch
        %1441 = sbr.rel (%p1439) target = $region56
      $region55: #{tpu_custom_call.1} parent=5 // pred_region
        %s1442 = ssub.s32 %s17, 2
        // Predicated region
        $region57: #{tpu_custom_call.1} parent=55 // pred_check
          %p1443 = pneg %p135
        $region58: #{tpu_custom_call.1} parent=55 // pred_check_branch
          %1445 = sbr.rel (%p1443) target = $region60
        $region59: #{tpu_custom_call.1} parent=55 // pred_region
          %s1446 = sand.u32 %s120, 1
          %s1447 = scalar_lea.sflag [#allocation5], %s1446
          %s1448 = sand.u32 %s120, 1
          %s1449 = smul.addr %s1448, 16
          %s1450 = scalar_lea.vmem [#allocation9], %s1449
          %1451 = dma.done %s1447, 256
        $region60: #{tpu_custom_call.1} parent=55 // pred_fallthru
          _
      $region56: #{tpu_custom_call.1} parent=5 // pred_fallthru
        _
    $region6: #{tpu_custom_call.1} parent=1 // loop_footer
      %s21 = sadd.s32 1, %s17
    $region7: #{tpu_custom_call.1} parent=1 // loop_footer_branch
      %16 = sbr.rel target = $region3
    $region8: #{tpu_custom_call.1} parent=1 // loop_exit
      _
    %1452 = vsyncpa [#allocation4], 1
    %s1453 = scalar_lea.sflag [#allocation4], 1
    %1454 = vsyncpa %s1453, 1
    %1455 = vsyncpa [#allocation7], 1
    %1456 = vsyncpa [#allocation5], 1
    %s1457 = scalar_lea.sflag [#allocation5], 1
    %1458 = vsyncpa %s1457, 1

</llo_original>
